<compile_context>
chip_gen: v7x
topology: tpu7x:2x2x1
jax: 0.10.0
libtpu: 0.0.40
codegen_flags: <defaults>
</compile_context>

<pallas_src>
import functools

import jax
import jax.numpy as jnp
from jax.experimental import pallas as pl
from jax.experimental.pallas import tpu as pltpu

LN_EPS = 1e-5


# ---------------------------------------------------------------- helpers

def _round_up(v, m):
    return ((v + m - 1) // m) * m


def _pad2(x, rows, cols):
    return jnp.pad(x, ((0, rows - x.shape[0]), (0, cols - x.shape[1])))


def _physical_vmem_bytes():
    try:
        cap = getattr(pltpu.get_tpu_info(), "vmem_capacity_bytes", None)
        if cap:
            return int(cap)
    except Exception:
        pass
    return 64 * 1024 * 1024  # conservative default: v7x per-TensorCore VMEM


def _vmem_limit(need_bytes, phys_bytes):
    # never request less than what the call needs, never more than ~85% physical
    return int(min(phys_bytes * 0.85, max(need_bytes, 16 * 1024 * 1024)))


def _aggregate_vmem_bytes(tm, n_p, e_p):
    return (2 * tm * n_p * 2        # double-buffered A_hat row block (bf16)
            + 2 * n_p * e_p * 2     # resident xw (bf16, assume 2 buffers)
            + 2 * tm * e_p * 2      # double-buffered output rows (bf16)
            + 2 * e_p * 4           # bias (f32)
            + (4 << 20))            # slack for compiler temporaries


def _plan_row_tile(n, e_p, phys_vmem):
    """Pick node padding N_p and row-tile TM so the aggregation call fits VMEM.
    Prefer >= 2 row tiles so the parallel grid axis can be sharded across the
    two v7x TensorCores."""
    n_p = _round_up(max(n, 8), 128)
    budget = int(phys_vmem * 0.7)
    fitting = [tm for tm in (512, 384, 256, 128)
               if tm <= n_p and n_p % tm == 0
               and _aggregate_vmem_bytes(tm, n_p, e_p) <= budget]
    multi = [tm for tm in fitting if n_p // tm >= 2]
    tm = (multi or fitting or [128])[0]
    return tm, n_p


# ---------------------------------------------------------------- kernels

def _dense_kernel(*refs, add_bias):
    """out_rows = x_rows @ W (+ b).  bf16 MXU operands, f32 accumulation."""
    if add_bias:
        x_ref, w_ref, b_ref, o_ref = refs
    else:
        x_ref, w_ref, o_ref = refs
    acc = jnp.dot(x_ref[...], w_ref[...], preferred_element_type=jnp.float32)
    if add_bias:
        acc = acc + b_ref[...]
    o_ref[...] = acc.astype(o_ref.dtype)


def _aggregate_kernel(a_ref, xw_ref, b_ref, o_ref, *, do_ln, e_true):
    """out_rows = post(A_rows @ xw + b); post = [LayerNorm(affine=False)] -> ReLU.

    A is a streamed (TM, N_p) row block; xw is the resident (N_p, E_p) bf16
    per-layer intermediate.  LayerNorm stats are exact on the padded lane axis
    because padded lanes of (A @ xw + b) are exactly zero (zero-padded W
    columns / bias lanes) and the variance pass masks padded lanes explicitly.
    """
    hh = jnp.dot(a_ref[...], xw_ref[...], preferred_element_type=jnp.float32) + b_ref[...]
    if do_ln:
        inv_e = 1.0 / float(e_true)
        mu = jnp.sum(hh, axis=-1, keepdims=True) * inv_e      # padded lanes are 0 -> exact mean
        lane = jax.lax.broadcasted_iota(jnp.int32, hh.shape, 1)
        d = jnp.where(lane < e_true, hh - mu, 0.0)             # masked two-pass variance
        var = jnp.sum(d * d, axis=-1, keepdims=True) * inv_e
        hh = d * jax.lax.rsqrt(var + LN_EPS)                    # padded lanes stay exactly zero
    o_ref[...] = jnp.maximum(hh, 0.0).astype(o_ref.dtype)       # activation; dropout = identity


# ---------------------------------------------------------------- call wrappers

def _dense(x, w, *, tm, phys_vmem, bias=None, out_dtype=jnp.bfloat16):
    n_p, k = x.shape
    m = w.shape[1]
    grid = (n_p // tm,)
    in_specs = [pl.BlockSpec((tm, k), lambda i: (i, 0)),        # row tile of x
                pl.BlockSpec((k, m), lambda i: (0, 0))]         # resident weight
    args = [x, w]
    if bias is not None:
        in_specs.append(pl.BlockSpec((1, m), lambda i: (0, 0)))
        args.append(bias)
    need = 2 * tm * k * 2 + 2 * k * m * 2 + 2 * tm * m * 2 + 2 * m * 4 + (4 << 20)
    return pl.pallas_call(
        functools.partial(_dense_kernel, add_bias=bias is not None),
        out_shape=jax.ShapeDtypeStruct((n_p, m), out_dtype),
        grid=grid,
        in_specs=in_specs,
        out_specs=pl.BlockSpec((tm, m), lambda i: (i, 0)),
        compiler_params=pltpu.CompilerParams(
            dimension_semantics=("parallel",),
            vmem_limit_bytes=_vmem_limit(need, phys_vmem)),
        cost_estimate=pl.CostEstimate(
            flops=2 * n_p * k * m,
            transcendentals=0,
            bytes_accessed=n_p * k * 2 + k * m * 2 + n_p * m * 2),
    )(*args)


def _aggregate(a_p, xw, b, *, tm, e_true, do_ln, phys_vmem):
    n_p = a_p.shape[0]
    e_p = xw.shape[1]
    grid = (n_p // tm,)
    need = _aggregate_vmem_bytes(tm, n_p, e_p)
    return pl.pallas_call(
        functools.partial(_aggregate_kernel, do_ln=do_ln, e_true=e_true),
        out_shape=jax.ShapeDtypeStruct((n_p, e_p), jnp.bfloat16),
        grid=grid,
        in_specs=[pl.BlockSpec((tm, n_p), lambda i: (i, 0)),    # streamed A_hat row block
                  pl.BlockSpec((n_p, e_p), lambda i: (0, 0)),   # resident xw (bf16)
                  pl.BlockSpec((1, e_p), lambda i: (0, 0))],    # bias
        out_specs=pl.BlockSpec((tm, e_p), lambda i: (i, 0)),
        compiler_params=pltpu.CompilerParams(
            dimension_semantics=("parallel",),
            vmem_limit_bytes=_vmem_limit(need, phys_vmem)),
        cost_estimate=pl.CostEstimate(
            flops=2 * n_p * n_p * e_p,
            transcendentals=n_p if do_ln else 0,
            bytes_accessed=n_p * n_p * 2 + 2 * n_p * e_p * 2 + e_p * 4),
    )(a_p, xw, b)


# ---------------------------------------------------------------- forward

def gcn_node_forward(a_hat, nfeat, params):
    n, din = nfeat.shape
    e = params["enc_w"].shape[1]
    dout = params["pred_w"].shape[1]

    # Lane padding: 256 when the true dim already spans the v6e/v7x 2x256 MXU
    # width, else 128 (v5e MXU width / minimum lane tile).
    def _pad_lane(d):
        return _round_up(d, 256) if d >= 256 else _round_up(d, 128)

    din_p, e_p, dout_p = _pad_lane(din), _pad_lane(e), _pad_lane(dout)

    phys_vmem = _physical_vmem_bytes()
    tm, n_p = _plan_row_tile(n, e_p, phys_vmem)

    # Zero-padding invariant (required for padded lanes/rows to stay harmless):
    #   * weights: padded rows AND columns are zero
    #   * biases / A_hat: padded lanes / rows / columns are zero
    # => padded lanes of every pre-norm activation are exactly zero, and padded
    #    node rows never leak into true rows (A_hat's padded columns are zero);
    #    the final [:n, :dout] slice drops them.
    a_p = _pad2(a_hat.astype(jnp.float32), n_p, n_p).astype(jnp.bfloat16)
    x_p = _pad2(nfeat.astype(jnp.float32), n_p, din_p).astype(jnp.bfloat16)
    enc_w = _pad2(params["enc_w"], din_p, e_p).astype(jnp.bfloat16)
    enc_b = _pad2(params["enc_b"], 1, e_p).astype(jnp.float32)
    pred_w = _pad2(params["pred_w"], e_p, dout_p).astype(jnp.bfloat16)
    pred_b = _pad2(params["pred_b"], 1, dout_p).astype(jnp.float32)

    # node_encoder -> ReLU -> dropout(identity)
    xw = _dense(x_p, enc_w, tm=tm, phys_vmem=phys_vmem)
    h = _aggregate(a_p, xw, enc_b, tm=tm, e_true=e, do_ln=False, phys_vmem=phys_vmem)

    # message-passing layers: GCNConv -> LayerNorm(affine=False) -> ReLU -> dropout(identity)
    # One call pair per layer: only this layer's weights are ever VMEM-resident.
    for w_l, b_l in zip(params["layer_w"], params["layer_b"]):
        w_p = _pad2(w_l, e_p, e_p).astype(jnp.bfloat16)
        b_p = _pad2(b_l, 1, e_p).astype(jnp.float32)
        xw = _dense(h, w_p, tm=tm, phys_vmem=phys_vmem)
        h = _aggregate(a_p, xw, b_p, tm=tm, e_true=e, do_ln=True, phys_vmem=phys_vmem)

    # NodePredict: Linear(embed_dim, output_dim)
    out_p = _dense(h, pred_w, tm=tm, phys_vmem=phys_vmem, bias=pred_b,
                   out_dtype=jnp.float32)
    return out_p[:n, :dout]


# ---------------------------------------------------------------- plain-JAX reference

def gcn_node_reference(a_hat, nfeat, params):
    h = jnp.maximum(a_hat @ (nfeat @ params["enc_w"]) + params["enc_b"], 0.0)
    for w, b in zip(params["layer_w"], params["layer_b"]):
        hh = a_hat @ (h @ w) + b
        mu = jnp.mean(hh, axis=-1, keepdims=True)
        var = jnp.mean((hh - mu) ** 2, axis=-1, keepdims=True)
        h = jnp.maximum((hh - mu) * jax.lax.rsqrt(var + LN_EPS), 0.0)
    return h @ params["pred_w"] + params["pred_b"]


# ---------------------------------------------------------------- example inputs

def build_normalized_adjacency(key, n, edge_prob=0.15):
    u = jax.random.uniform(key, (n, n))
    a = (u < edge_prob).astype(jnp.float32)
    a = jnp.maximum(a, a.T)                       # symmetric
    a = a * (1.0 - jnp.eye(n)) + jnp.eye(n)       # add self-loops
    deg = jnp.sum(a, axis=1)
    d_inv_sqrt = 1.0 / jnp.sqrt(deg)
    return a * d_inv_sqrt[:, None] * d_inv_sqrt[None, :]


def init_params(key, input_dim, embed_dim, output_dim, num_layer):
    keys = jax.random.split(key, 2 * num_layer + 4)
    scale = 0.1
    params = {
        "enc_w": scale * jax.random.normal(keys[0], (input_dim, embed_dim), jnp.float32),
        "enc_b": scale * jax.random.normal(keys[1], (1, embed_dim), jnp.float32),
        "layer_w": [],
        "layer_b": [],
        "pred_w": scale * jax.random.normal(keys[2], (embed_dim, output_dim), jnp.float32),
        "pred_b": scale * jax.random.normal(keys[3], (1, output_dim), jnp.float32),
    }
    for i in range(num_layer):
        params["layer_w"].append(
            scale * jax.random.normal(keys[4 + 2 * i], (embed_dim, embed_dim), jnp.float32))
        params["layer_b"].append(
            scale * jax.random.normal(keys[5 + 2 * i], (1, embed_dim), jnp.float32))
    return params


# TODO(synk): EdgeEncoder / econv edge-feature path is skipped because the reference
# forward is exercised with efeat=None; skip_type='None' so no skip layers are built.

if __name__ == "__main__":
    N = 300            # number of nodes (pads to 384 -> 3 row tiles of 128: exercises the grid)
    INPUT_DIM = 16
    EMBED_DIM = 32
    OUTPUT_DIM = 8
    NUM_LAYER = 2

    root = jax.random.PRNGKey(0)
    k_graph, k_feat, k_param = jax.random.split(root, 3)

    a_hat = build_normalized_adjacency(k_graph, N)
    nfeat = jax.random.normal(k_feat, (N, INPUT_DIM), jnp.float32)
    params = init_params(k_param, INPUT_DIM, EMBED_DIM, OUTPUT_DIM, NUM_LAYER)

    fwd = jax.jit(gcn_node_forward)
    out = fwd(a_hat, nfeat, params)
    jax.block_until_ready(out)

    assert out.shape == (N, OUTPUT_DIM)
    assert bool(jnp.all(jnp.isfinite(out)))

    # Loose sanity check vs. f32 reference (bf16 matmul operands introduce small error).
    ref = gcn_node_reference(a_hat, nfeat, params)
    max_abs_diff = float(jnp.max(jnp.abs(out - ref)))
    assert max_abs_diff < 0.5, f"max_abs_diff too large: {max_abs_diff}"

    print("KERNEL_OK")
</pallas_src>

<mosaic_0001>
module attributes {stable_mosaic.version = 11 : i64} {
  func.func @_aggregate_kernel(%arg0: i32, %arg1: memref<128x384xbf16, #tpu.memory_space<vmem>>, %arg2: memref<384x128xbf16, #tpu.memory_space<vmem>>, %arg3: memref<1x128xf32, #tpu.memory_space<vmem>>, %arg4: memref<128x128xbf16, #tpu.memory_space<vmem>>) attributes {dimension_semantics = [#tpu.dimension_semantics<parallel>], iteration_bounds = array<i64: 3>, scalar_prefetch = 0 : i64, scratch_operands = 0 : i64, tpu.core_type = #tpu.core_type<tc>, window_params = [{transform_indices = @transform_0, window_bounds = array<i64: 128, 384>}, {pipeline_mode = #tpu.pipeline_mode<synchronous>, transform_indices = @transform_1, window_bounds = array<i64: 384, 128>}, {pipeline_mode = #tpu.pipeline_mode<synchronous>, transform_indices = @transform_2, window_bounds = array<i64: 1, 128>}, {transform_indices = @transform_3, window_bounds = array<i64: 128, 128>}]} {
    %c0 = arith.constant 0 : index
    %c0_0 = arith.constant 0 : index
    %0 = vector.load %arg1[%c0, %c0_0] : memref<128x384xbf16, #tpu.memory_space<vmem>>, vector<128x384xbf16>
    %c0_1 = arith.constant 0 : index
    %c0_2 = arith.constant 0 : index
    %1 = vector.load %arg2[%c0_1, %c0_2] : memref<384x128xbf16, #tpu.memory_space<vmem>>, vector<384x128xbf16>
    %cst = arith.constant dense<0.000000e+00> : vector<128x128xf32>
    %2 = tpu.matmul %0, %1, %cst {dimension_numbers = #tpu.dot_dimension_numbers<[1], [0], [0], [1], [0, 0, 1, 1], [], []>} : vector<128x384xbf16>, vector<384x128xbf16>, vector<128x128xf32> -> vector<128x128xf32>
    %c0_3 = arith.constant 0 : index
    %c0_4 = arith.constant 0 : index
    %3 = vector.load %arg3[%c0_3, %c0_4] : memref<1x128xf32, #tpu.memory_space<vmem>>, vector<1x128xf32>
    %4 = vector.broadcast %3 : vector<1x128xf32> to vector<128x128xf32>
    %5 = arith.addf %2, %4 : vector<128x128xf32>
    %cst_5 = arith.constant 0.000000e+00 : f32
    %6 = vector.broadcast %cst_5 : f32 to vector<128x128xf32>
    %7 = arith.maximumf %5, %6 : vector<128x128xf32>
    %8 = arith.truncf %7 : vector<128x128xf32> to vector<128x128xbf16>
    %c0_6 = arith.constant 0 : index
    %c0_7 = arith.constant 0 : index
    %9 = vector.load %arg4[%c0_6, %c0_7] : memref<128x128xbf16, #tpu.memory_space<vmem>>, vector<128x128xbf16>
    tpu.vector_store %arg4[%c0_6, %c0_7], %8 {strides = array<i32>} : memref<128x128xbf16, #tpu.memory_space<vmem>>, vector<128x128xbf16>,
    return
  }
  func.func @transform_0(%arg0: i32) -> (i32, i32) {
    %c0_i32 = arith.constant 0 : i32
    %c0_i32_0 = arith.constant 0 : i32
    return %arg0, %c0_i32 : i32, i32
  }
  func.func @transform_1(%arg0: i32) -> (i32, i32) {
    %c0_i32 = arith.constant 0 : i32
    %c0_i32_0 = arith.constant 0 : i32
    %c0_i32_1 = arith.constant 0 : i32
    return %c0_i32, %c0_i32_0 : i32, i32
  }
  func.func @transform_2(%arg0: i32) -> (i32, i32) {
    %c0_i32 = arith.constant 0 : i32
    %c0_i32_0 = arith.constant 0 : i32
    %c0_i32_1 = arith.constant 0 : i32
    return %c0_i32, %c0_i32_0 : i32, i32
  }
  func.func @transform_3(%arg0: i32) -> (i32, i32) {
    %c0_i32 = arith.constant 0 : i32
    %c0_i32_0 = arith.constant 0 : i32
    return %arg0, %c0_i32 : i32, i32
  }
}

module attributes {stable_mosaic.version = 11 : i64} {
  func.func @_dense_kernel(%arg0: i32, %arg1: memref<128x128xbf16, #tpu.memory_space<vmem>>, %arg2: memref<128x128xbf16, #tpu.memory_space<vmem>>, %arg3: memref<128x128xbf16, #tpu.memory_space<vmem>>) attributes {dimension_semantics = [#tpu.dimension_semantics<parallel>], iteration_bounds = array<i64: 3>, scalar_prefetch = 0 : i64, scratch_operands = 0 : i64, tpu.core_type = #tpu.core_type<tc>, window_params = [{transform_indices = @transform_0, window_bounds = array<i64: 128, 128>}, {pipeline_mode = #tpu.pipeline_mode<synchronous>, transform_indices = @transform_1, window_bounds = array<i64: 128, 128>}, {transform_indices = @transform_2, window_bounds = array<i64: 128, 128>}]} {
    %c0 = arith.constant 0 : index
    %c0_0 = arith.constant 0 : index
    %0 = vector.load %arg1[%c0, %c0_0] : memref<128x128xbf16, #tpu.memory_space<vmem>>, vector<128x128xbf16>
    %c0_1 = arith.constant 0 : index
    %c0_2 = arith.constant 0 : index
    %1 = vector.load %arg2[%c0_1, %c0_2] : memref<128x128xbf16, #tpu.memory_space<vmem>>, vector<128x128xbf16>
    %cst = arith.constant dense<0.000000e+00> : vector<128x128xf32>
    %2 = tpu.matmul %0, %1, %cst {dimension_numbers = #tpu.dot_dimension_numbers<[1], [0], [0], [1], [0, 0, 1, 1], [], []>} : vector<128x128xbf16>, vector<128x128xbf16>, vector<128x128xf32> -> vector<128x128xf32>
    %3 = arith.truncf %2 : vector<128x128xf32> to vector<128x128xbf16>
    %c0_3 = arith.constant 0 : index
    %c0_4 = arith.constant 0 : index
    %4 = vector.load %arg3[%c0_3, %c0_4] : memref<128x128xbf16, #tpu.memory_space<vmem>>, vector<128x128xbf16>
    tpu.vector_store %arg3[%c0_3, %c0_4], %3 {strides = array<i32>} : memref<128x128xbf16, #tpu.memory_space<vmem>>, vector<128x128xbf16>,
    return
  }
  func.func @transform_0(%arg0: i32) -> (i32, i32) {
    %c0_i32 = arith.constant 0 : i32
    %c0_i32_0 = arith.constant 0 : i32
    return %arg0, %c0_i32 : i32, i32
  }
  func.func @transform_1(%arg0: i32) -> (i32, i32) {
    %c0_i32 = arith.constant 0 : i32
    %c0_i32_0 = arith.constant 0 : i32
    %c0_i32_1 = arith.constant 0 : i32
    return %c0_i32, %c0_i32_0 : i32, i32
  }
  func.func @transform_2(%arg0: i32) -> (i32, i32) {
    %c0_i32 = arith.constant 0 : i32
    %c0_i32_0 = arith.constant 0 : i32
    return %arg0, %c0_i32 : i32, i32
  }
}

module attributes {stable_mosaic.version = 11 : i64} {
  func.func @_aggregate_kernel(%arg0: i32, %arg1: memref<128x384xbf16, #tpu.memory_space<vmem>>, %arg2: memref<384x128xbf16, #tpu.memory_space<vmem>>, %arg3: memref<1x128xf32, #tpu.memory_space<vmem>>, %arg4: memref<128x128xbf16, #tpu.memory_space<vmem>>) attributes {dimension_semantics = [#tpu.dimension_semantics<parallel>], iteration_bounds = array<i64: 3>, scalar_prefetch = 0 : i64, scratch_operands = 0 : i64, tpu.core_type = #tpu.core_type<tc>, window_params = [{transform_indices = @transform_0, window_bounds = array<i64: 128, 384>}, {pipeline_mode = #tpu.pipeline_mode<synchronous>, transform_indices = @transform_1, window_bounds = array<i64: 384, 128>}, {pipeline_mode = #tpu.pipeline_mode<synchronous>, transform_indices = @transform_2, window_bounds = array<i64: 1, 128>}, {transform_indices = @transform_3, window_bounds = array<i64: 128, 128>}]} {
    %c0 = arith.constant 0 : index
    %c0_0 = arith.constant 0 : index
    %0 = vector.load %arg1[%c0, %c0_0] : memref<128x384xbf16, #tpu.memory_space<vmem>>, vector<128x384xbf16>
    %c0_1 = arith.constant 0 : index
    %c0_2 = arith.constant 0 : index
    %1 = vector.load %arg2[%c0_1, %c0_2] : memref<384x128xbf16, #tpu.memory_space<vmem>>, vector<384x128xbf16>
    %cst = arith.constant dense<0.000000e+00> : vector<128x128xf32>
    %2 = tpu.matmul %0, %1, %cst {dimension_numbers = #tpu.dot_dimension_numbers<[1], [0], [0], [1], [0, 0, 1, 1], [], []>} : vector<128x384xbf16>, vector<384x128xbf16>, vector<128x128xf32> -> vector<128x128xf32>
    %c0_3 = arith.constant 0 : index
    %c0_4 = arith.constant 0 : index
    %3 = vector.load %arg3[%c0_3, %c0_4] : memref<1x128xf32, #tpu.memory_space<vmem>>, vector<1x128xf32>
    %4 = vector.broadcast %3 : vector<1x128xf32> to vector<128x128xf32>
    %5 = arith.addf %2, %4 : vector<128x128xf32>
    %cst_5 = arith.constant dense<0.000000e+00> : vector<128xf32>
    %6 = vector.multi_reduction <add>, %5, %cst_5 [1] : vector<128x128xf32> to vector<128xf32>
    %7 = vector.shape_cast %6 : vector<128xf32> to vector<128x1xf32>
    %cst_6 = arith.constant 3.125000e-02 : f32
    %8 = vector.broadcast %cst_6 : f32 to vector<128x1xf32>
    %9 = arith.mulf %7, %8 : vector<128x1xf32>
    %10 = tpu.iota {dimensions = array<i32: 1>} : vector<128x128xi32>
    %c32_i32 = arith.constant 32 : i32
    %11 = vector.broadcast %c32_i32 : i32 to vector<128x128xi32>
    %12 = arith.cmpi slt, %10, %11 : vector<128x128xi32>
    %13 = vector.broadcast %9 : vector<128x1xf32> to vector<128x128xf32>
    %14 = arith.subf %5, %13 : vector<128x128xf32>
    %cst_7 = arith.constant 0.000000e+00 : f32
    %15 = vector.broadcast %cst_7 : f32 to vector<128x128xf32>
    %16 = arith.select %12, %14, %15 : vector<128x128xi1>, vector<128x128xf32>
    %17 = arith.mulf %16, %16 : vector<128x128xf32>
    %cst_8 = arith.constant dense<0.000000e+00> : vector<128xf32>
    %18 = vector.multi_reduction <add>, %17, %cst_8 [1] : vector<128x128xf32> to vector<128xf32>
    %19 = vector.shape_cast %18 : vector<128xf32> to vector<128x1xf32>
    %cst_9 = arith.constant 3.125000e-02 : f32
    %20 = vector.broadcast %cst_9 : f32 to vector<128x1xf32>
    %21 = arith.mulf %19, %20 : vector<128x1xf32>
    %cst_10 = arith.constant 9.99999974E-6 : f32
    %22 = vector.broadcast %cst_10 : f32 to vector<128x1xf32>
    %23 = arith.addf %21, %22 : vector<128x1xf32>
    %24 = math.rsqrt %23 : vector<128x1xf32>
    %25 = vector.broadcast %24 : vector<128x1xf32> to vector<128x128xf32>
    %26 = arith.mulf %16, %25 : vector<128x128xf32>
    %cst_11 = arith.constant 0.000000e+00 : f32
    %27 = vector.broadcast %cst_11 : f32 to vector<128x128xf32>
    %28 = arith.maximumf %26, %27 : vector<128x128xf32>
    %29 = arith.truncf %28 : vector<128x128xf32> to vector<128x128xbf16>
    %c0_12 = arith.constant 0 : index
    %c0_13 = arith.constant 0 : index
    %30 = vector.load %arg4[%c0_12, %c0_13] : memref<128x128xbf16, #tpu.memory_space<vmem>>, vector<128x128xbf16>
    tpu.vector_store %arg4[%c0_12, %c0_13], %29 {strides = array<i32>} : memref<128x128xbf16, #tpu.memory_space<vmem>>, vector<128x128xbf16>,
    return
  }
  func.func @transform_0(%arg0: i32) -> (i32, i32) {
    %c0_i32 = arith.constant 0 : i32
    %c0_i32_0 = arith.constant 0 : i32
    return %arg0, %c0_i32 : i32, i32
  }
  func.func @transform_1(%arg0: i32) -> (i32, i32) {
    %c0_i32 = arith.constant 0 : i32
    %c0_i32_0 = arith.constant 0 : i32
    %c0_i32_1 = arith.constant 0 : i32
    return %c0_i32, %c0_i32_0 : i32, i32
  }
  func.func @transform_2(%arg0: i32) -> (i32, i32) {
    %c0_i32 = arith.constant 0 : i32
    %c0_i32_0 = arith.constant 0 : i32
    %c0_i32_1 = arith.constant 0 : i32
    return %c0_i32, %c0_i32_0 : i32, i32
  }
  func.func @transform_3(%arg0: i32) -> (i32, i32) {
    %c0_i32 = arith.constant 0 : i32
    %c0_i32_0 = arith.constant 0 : i32
    return %arg0, %c0_i32 : i32, i32
  }
}

module attributes {stable_mosaic.version = 11 : i64} {
  func.func @_dense_kernel(%arg0: i32, %arg1: memref<128x128xbf16, #tpu.memory_space<vmem>>, %arg2: memref<128x128xbf16, #tpu.memory_space<vmem>>, %arg3: memref<1x128xf32, #tpu.memory_space<vmem>>, %arg4: memref<128x128xf32, #tpu.memory_space<vmem>>) attributes {dimension_semantics = [#tpu.dimension_semantics<parallel>], iteration_bounds = array<i64: 3>, scalar_prefetch = 0 : i64, scratch_operands = 0 : i64, tpu.core_type = #tpu.core_type<tc>, window_params = [{transform_indices = @transform_0, window_bounds = array<i64: 128, 128>}, {pipeline_mode = #tpu.pipeline_mode<synchronous>, transform_indices = @transform_1, window_bounds = array<i64: 128, 128>}, {pipeline_mode = #tpu.pipeline_mode<synchronous>, transform_indices = @transform_2, window_bounds = array<i64: 1, 128>}, {transform_indices = @transform_3, window_bounds = array<i64: 128, 128>}]} {
    %c0 = arith.constant 0 : index
    %c0_0 = arith.constant 0 : index
    %0 = vector.load %arg1[%c0, %c0_0] : memref<128x128xbf16, #tpu.memory_space<vmem>>, vector<128x128xbf16>
    %c0_1 = arith.constant 0 : index
    %c0_2 = arith.constant 0 : index
    %1 = vector.load %arg2[%c0_1, %c0_2] : memref<128x128xbf16, #tpu.memory_space<vmem>>, vector<128x128xbf16>
    %cst = arith.constant dense<0.000000e+00> : vector<128x128xf32>
    %2 = tpu.matmul %0, %1, %cst {dimension_numbers = #tpu.dot_dimension_numbers<[1], [0], [0], [1], [0, 0, 1, 1], [], []>} : vector<128x128xbf16>, vector<128x128xbf16>, vector<128x128xf32> -> vector<128x128xf32>
    %c0_3 = arith.constant 0 : index
    %c0_4 = arith.constant 0 : index
    %3 = vector.load %arg3[%c0_3, %c0_4] : memref<1x128xf32, #tpu.memory_space<vmem>>, vector<1x128xf32>
    %4 = vector.broadcast %3 : vector<1x128xf32> to vector<128x128xf32>
    %5 = arith.addf %2, %4 : vector<128x128xf32>
    %c0_5 = arith.constant 0 : index
    %c0_6 = arith.constant 0 : index
    %6 = vector.load %arg4[%c0_5, %c0_6] : memref<128x128xf32, #tpu.memory_space<vmem>>, vector<128x128xf32>
    tpu.vector_store %arg4[%c0_5, %c0_6], %5 {strides = array<i32>} : memref<128x128xf32, #tpu.memory_space<vmem>>, vector<128x128xf32>,
    return
  }
  func.func @transform_0(%arg0: i32) -> (i32, i32) {
    %c0_i32 = arith.constant 0 : i32
    %c0_i32_0 = arith.constant 0 : i32
    return %arg0, %c0_i32 : i32, i32
  }
  func.func @transform_1(%arg0: i32) -> (i32, i32) {
    %c0_i32 = arith.constant 0 : i32
    %c0_i32_0 = arith.constant 0 : i32
    %c0_i32_1 = arith.constant 0 : i32
    return %c0_i32, %c0_i32_0 : i32, i32
  }
  func.func @transform_2(%arg0: i32) -> (i32, i32) {
    %c0_i32 = arith.constant 0 : i32
    %c0_i32_0 = arith.constant 0 : i32
    %c0_i32_1 = arith.constant 0 : i32
    return %c0_i32, %c0_i32_0 : i32, i32
  }
  func.func @transform_3(%arg0: i32) -> (i32, i32) {
    %c0_i32 = arith.constant 0 : i32
    %c0_i32_0 = arith.constant 0 : i32
    return %arg0, %c0_i32 : i32, i32
  }
}

</mosaic_0001>

<llo_original>
// kernel: gcn_node_forward.7
$region0: #{gcn_node_forward.7}
  #allocation0 [shape = 'u32[]', space=smem, size = 0x4, offset = 0x4, fixed_abs, tag = 'smem constant byte address 0x4 - core index']
  #allocation1 [shape = 'u32[144,128]{1,0:T(1,128)}', space=vmem, size = 0x12000, scoped, tag = 'internal scratch']
  %s0 = inlined_call_operand.vmem [shape: bf16[384,128], index: 0, kind: input, shape index: {}]
  %s1 = inlined_call_operand.vmem [shape: bf16[128,128], index: 1, kind: input, shape index: {}]
  %s2 = inlined_call_operand.vmem [shape: bf16[384,128], index: 2, kind: output, shape index: {}]
  %s3 = sld [smem:[#allocation0]]
  $region41: #{gcn_node_forward.7} parent=0
    _
  %s5 = ssub.s32 1, %s3
  %s6 = scalar_select 0, %s5, %s3
  loop: start=0, step=1, limit=5
  $region2: #{gcn_node_forward.7} parent=0 // loop_pre_header
    _
  $region3: #{gcn_node_forward.7} parent=0 // loop_header
    %s8 = sphi 0, %s12
    %p9 = scmp.ge.s32.totalorder %s8, 5
    %s18 = sphi 0, %s20
    %s21 = sphi 0, %s18
    %s22 = sphi 0, %s21
    %s38 = sphi 0, %s22
    %s42 = sphi 0, %s42
    %s44 = sphi 0, %s42
    %s45 = sphi 0, %s44
    %s59 = sphi 0, %s45
    %s65 = sphi 0, %s67
    %s68 = sphi 0, %s65
    %s69 = sphi 0, %s68
    %s85 = sphi 0, %s69
  $region4: #{gcn_node_forward.7} parent=0 // loop_header_branch
    %11 = sbr.rel (%p9) target = $region8
  $region5: #{gcn_node_forward.7} parent=0 // loop_body
    %s13 = ssub.s32 %s8, 1
    %s14 = ssub.s32 %s8, 2
    %s15 = sadd.s32 %s8, 1
    %s16 = ssub.s32 %s8, %s15
    %p17 = scmp.eq.s32.totalorder %s16, 0
    %s19 = sadd.s32 %s18, 1
    %s20 = scalar_select %p17, %s18, %s19
    %p23 = pneg %p17
    %p24 = scmp.eq.s32.totalorder %s8, 2
    %p25 = por %p23, %p24
    %p26 = scmp.ne.s32.totalorder %s18, %s21
    %p27 = scmp.eq.s32.totalorder %s8, 0
    %p28 = por %p26, %p27
    %p29 = scmp.ne.s32.totalorder %s18, %s21
    %p30 = scmp.eq.s32.totalorder %s13, 2
    %p31 = por %p29, %p30
    %p32 = scmp.ne.s32.totalorder %s21, %s22
    %p33 = scmp.eq.s32.totalorder %s13, 0
    %p34 = por %p32, %p33
    %p35 = scmp.ne.s32.totalorder %s21, %s22
    %p36 = scmp.eq.s32.totalorder %s14, 2
    %p37 = por %p35, %p36
    %p39 = scmp.ne.s32.totalorder %s22, %s38
    %p40 = scmp.eq.s32.totalorder %s14, 0
    %p41 = por %p39, %p40
    %s43 = sadd.s32 %s42, 1
    %p46 = scmp.eq.s32.totalorder %s8, 2
    %p47 = scmp.ne.s32.totalorder %s42, %s44
    %p48 = scmp.eq.s32.totalorder %s8, 0
    %p49 = por %p47, %p48
    %p50 = scmp.ne.s32.totalorder %s42, %s44
    %p51 = scmp.eq.s32.totalorder %s13, 2
    %p52 = por %p50, %p51
    %p53 = scmp.ne.s32.totalorder %s44, %s45
    %p54 = scmp.eq.s32.totalorder %s13, 0
    %p55 = por %p53, %p54
    %p56 = scmp.ne.s32.totalorder %s44, %s45
    %p57 = scmp.eq.s32.totalorder %s14, 2
    %p58 = por %p56, %p57
    %p60 = scmp.ne.s32.totalorder %s45, %s59
    %p61 = scmp.eq.s32.totalorder %s14, 0
    %p62 = por %p60, %p61
    %s63 = ssub.s32 %s8, %s15
    %p64 = scmp.eq.s32.totalorder %s63, 0
    %s66 = sadd.s32 %s65, 1
    %s67 = scalar_select %p64, %s65, %s66
    %p70 = pneg %p64
    %p71 = scmp.eq.s32.totalorder %s8, 2
    %p72 = por %p70, %p71
    %p73 = scmp.ne.s32.totalorder %s65, %s68
    %p74 = scmp.eq.s32.totalorder %s8, 0
    %p75 = por %p73, %p74
    %p76 = scmp.ne.s32.totalorder %s65, %s68
    %p77 = scmp.eq.s32.totalorder %s13, 2
    %p78 = por %p76, %p77
    %p79 = scmp.ne.s32.totalorder %s68, %s69
    %p80 = scmp.eq.s32.totalorder %s13, 0
    %p81 = por %p79, %p80
    %p82 = scmp.ne.s32.totalorder %s68, %s69
    %p83 = scmp.eq.s32.totalorder %s14, 2
    %p84 = por %p82, %p83
    %p86 = scmp.ne.s32.totalorder %s69, %s85
    %p87 = scmp.eq.s32.totalorder %s14, 0
    %p88 = por %p86, %p87
    %p89 = scmp.le.s32.totalorder 1, %s8
    %p90 = scmp.lt.s32.totalorder %s8, 4
    %p91 = pnand %p89, %p90
    %p92 = pneg %p91
    // Predicated region
    $region9: #{gcn_node_forward.7} parent=5 // pred_check
      _
    $region10: #{gcn_node_forward.7} parent=5 // pred_check_branch
      %94 = sbr.rel (%p91) target = $region12
    $region11: #{gcn_node_forward.7} parent=5 // pred_region
      %s95 = ssub.s32 %s8, 1
      // Predicated region
      $region13: #{gcn_node_forward.7} parent=11 // pred_check
        %p96 = pneg %p55
      $region14: #{gcn_node_forward.7} parent=11 // pred_check_branch
        %98 = sbr.rel (%p96) target = $region16
      $region15: #{gcn_node_forward.7} parent=11 // pred_region
        _
      $region16: #{gcn_node_forward.7} parent=11 // pred_fallthru
        _
    $region12: #{gcn_node_forward.7} parent=5 // pred_fallthru
      _
    %p99 = scmp.lt.s32.totalorder %s8, 3
    // Predicated region
    $region17: #{gcn_node_forward.7} parent=5 // pred_check
      %p100 = pneg %p99
    $region18: #{gcn_node_forward.7} parent=5 // pred_check_branch
      %102 = sbr.rel (%p100) target = $region20
    $region19: #{gcn_node_forward.7} parent=5 // pred_region
      // Predicated region
      $region21: #{gcn_node_forward.7} parent=19 // pred_check
        %p103 = pneg %p28
      $region22: #{gcn_node_forward.7} parent=19 // pred_check_branch
        %105 = sbr.rel (%p103) target = $region24
      $region23: #{gcn_node_forward.7} parent=19 // pred_region
        %s106 = smul.u32 16, %s8
        %p107 = scmp.lt.s32.totalorder %s106, 47
        %s108 = scalar_select %p107, %s106, 47
        %s109 = smul.addr %s108, 4
        %s110 = scalar_lea.vmem %s0, %s109
        %s111 = smul.u32 16, %s8
      $region24: #{gcn_node_forward.7} parent=19 // pred_fallthru
        _
    $region20: #{gcn_node_forward.7} parent=5 // pred_fallthru
      _
    %p112 = scmp.le.s32.totalorder 1, %s8
    %p113 = scmp.lt.s32.totalorder %s8, 4
    %p114 = pnand %p112, %p113
    %p115 = pneg %p114
    // Predicated region
    $region25: #{gcn_node_forward.7} parent=5 // pred_check
      _
    $region26: #{gcn_node_forward.7} parent=5 // pred_check_branch
      %117 = sbr.rel (%p114) target = $region28
    $region27: #{gcn_node_forward.7} parent=5 // pred_region
      %s118 = ssub.s32 %s8, 1
      %s119 = smul.u32 16, %s13
      %p120 = scmp.lt.s32.totalorder %s119, 47
      %s121 = scalar_select %p120, %s119, 47
      %s122 = smul.addr %s121, 4
      %s123 = scalar_lea.vmem %s0, %s122
      %p124 = pneg %p34
      %p125 = pneg %p31
      %p126 = pneg %p55
      %p127 = pneg %p52
      %p128 = pneg %p81
      %p129 = pneg %p78
      %s130 = smul.u32 16, %s13
      %p131 = scmp.lt.s32.totalorder %s130, 47
      %s132 = scalar_select %p131, %s130, 47
      %s133 = smul.addr %s132, 4
      %s134 = scalar_lea.vmem %s2, %s133
      %s135 = smul.u32 16, %s13
      %p136 = scmp.lt.s32.totalorder %s135, 47
      %s137 = scalar_select %p136, %s135, 47
      %s138 = smul.addr %s137, 4
      %s139 = scalar_lea.vmem %s0, %s138
      %s140 = smul.u32 16, %s13
      %s141 = smul.u32 16, %s13
      %p142 = scmp.lt.s32.totalorder %s141, 47
      %s143 = scalar_select %p142, %s141, 47
      %s144 = smul.addr %s143, 4
      %s145 = scalar_lea.vmem %s2, %s144
      %s146 = smul.u32 16, %s13
      %v148 = vld [vmem:[%s139] sm:$0xf]
      %v149 = vld [vmem:[%s139 + $0x4] sm:$0xf]
      %v150 = vld [vmem:[%s139 + $0x8] sm:$0xf]
      %v151 = vld [vmem:[%s139 + $0xc] sm:$0xf]
      %v152 = vld [vmem:[%s139 + $0x10] sm:$0xf]
      %v153 = vld [vmem:[%s139 + $0x14] sm:$0xf]
      %v154 = vld [vmem:[%s139 + $0x18] sm:$0xf]
      %v155 = vld [vmem:[%s139 + $0x1c] sm:$0xf]
      %v156 = vld [vmem:[%s139 + $0x20] sm:$0xf]
      %v157 = vld [vmem:[%s139 + $0x24] sm:$0xf]
      %v158 = vld [vmem:[%s139 + $0x28] sm:$0xf]
      %v159 = vld [vmem:[%s139 + $0x2c] sm:$0xf]
      %v160 = vld [vmem:[%s139 + $0x30] sm:$0xf]
      %v161 = vld [vmem:[%s139 + $0x34] sm:$0xf]
      %v162 = vld [vmem:[%s139 + $0x38] sm:$0xf]
      %v163 = vld [vmem:[%s139 + $0x3c] sm:$0xf]
      %v164 = vld [vmem:[%s1] sm:$0xf]
      %v165 = vld [vmem:[%s1 + $0x4] sm:$0xf]
      %v166 = vld [vmem:[%s1 + $0x8] sm:$0xf]
      %v167 = vld [vmem:[%s1 + $0xc] sm:$0xf]
      %v168 = vld [vmem:[%s1 + $0x10] sm:$0xf]
      %v169 = vld [vmem:[%s1 + $0x14] sm:$0xf]
      %v170 = vld [vmem:[%s1 + $0x18] sm:$0xf]
      %v171 = vld [vmem:[%s1 + $0x1c] sm:$0xf]
      %v172 = vld [vmem:[%s1 + $0x20] sm:$0xf]
      %v173 = vld [vmem:[%s1 + $0x24] sm:$0xf]
      %v174 = vld [vmem:[%s1 + $0x28] sm:$0xf]
      %v175 = vld [vmem:[%s1 + $0x2c] sm:$0xf]
      %v176 = vld [vmem:[%s1 + $0x30] sm:$0xf]
      %v177 = vld [vmem:[%s1 + $0x34] sm:$0xf]
      %v178 = vld [vmem:[%s1 + $0x38] sm:$0xf]
      %v179 = vld [vmem:[%s1 + $0x3c] sm:$0xf]
      %v196 = vunpack.c.l.b16 %v148
      %v197 = vunpack.c.l.b16 %v149
      %v198 = vunpack.c.l.b16 %v150
      %v199 = vunpack.c.l.b16 %v151
      %v200 = vunpack.c.l.b16 %v152
      %v201 = vunpack.c.l.b16 %v153
      %v202 = vunpack.c.l.b16 %v154
      %v203 = vunpack.c.l.b16 %v155
      %v204 = vunpack.c.l.b16 %v156
      %v205 = vunpack.c.l.b16 %v157
      %v206 = vunpack.c.l.b16 %v158
      %v207 = vunpack.c.l.b16 %v159
      %v208 = vunpack.c.l.b16 %v160
      %v209 = vunpack.c.l.b16 %v161
      %v210 = vunpack.c.l.b16 %v162
      %v211 = vunpack.c.l.b16 %v163
      %v212 = vpack.c.b16 %v197, %v196
      %v213 = vpack.c.b16 %v199, %v198
      %v214 = vpack.c.b16 %v201, %v200
      %v215 = vpack.c.b16 %v203, %v202
      %v216 = vpack.c.b16 %v205, %v204
      %v217 = vpack.c.b16 %v207, %v206
      %v218 = vpack.c.b16 %v209, %v208
      %v219 = vpack.c.b16 %v211, %v210
      %v244 = vunpack.c.l.b16 %v164
      %v245 = vunpack.c.l.b16 %v165
      %v246 = vunpack.c.l.b16 %v166
      %v247 = vunpack.c.l.b16 %v167
      %v248 = vunpack.c.l.b16 %v168
      %v249 = vunpack.c.l.b16 %v169
      %v250 = vunpack.c.l.b16 %v170
      %v251 = vunpack.c.l.b16 %v171
      %v252 = vunpack.c.l.b16 %v172
      %v253 = vunpack.c.l.b16 %v173
      %v254 = vunpack.c.l.b16 %v174
      %v255 = vunpack.c.l.b16 %v175
      %v256 = vunpack.c.l.b16 %v176
      %v257 = vunpack.c.l.b16 %v177
      %v258 = vunpack.c.l.b16 %v178
      %v259 = vunpack.c.l.b16 %v179
      %v260 = vpack.c.b16 %v245, %v244
      %v261 = vpack.c.b16 %v247, %v246
      %v262 = vpack.c.b16 %v249, %v248
      %v263 = vpack.c.b16 %v251, %v250
      %v264 = vpack.c.b16 %v253, %v252
      %v265 = vpack.c.b16 %v255, %v254
      %v266 = vpack.c.b16 %v257, %v256
      %v267 = vpack.c.b16 %v259, %v258
      %276 = vmatprep.subr.bf16.mxu0 0
      %277 = vmatpush1.bf16.msra.mxu0 %v260
      %278 = vmatprep.subr.bf16.mxu0 0
      %279 = vmatpush1.bf16.msra.mxu0 %v261
      %280 = vmatprep.subr.bf16.mxu0 0
      %281 = vmatpush1.bf16.msra.mxu0 %v262
      %282 = vmatprep.subr.bf16.mxu0 0
      %283 = vmatpush1.bf16.msra.mxu0 %v263
      %284 = vmatprep.subr.bf16.mxu0 0
      %285 = vmatpush1.bf16.msra.mxu0 %v264
      %286 = vmatprep.subr.bf16.mxu0 0
      %287 = vmatpush1.bf16.msra.mxu0 %v265
      %288 = vmatprep.subr.bf16.mxu0 0
      %289 = vmatpush1.bf16.msra.mxu0 %v266
      %290 = vmatprep.subr.bf16.mxu0 0
      %291 = vmatpush1.bf16.msra.mxu0 %v267
      %292 = vmatprep.subr.bf16.mxu0 0
      %293 = vmatpush1.bf16.msra.mxu0 0
      %294 = vmatprep.subr.bf16.mxu0 0
      %295 = vmatpush1.bf16.msra.mxu0 0
      %296 = vmatprep.subr.bf16.mxu0 0
      %297 = vmatpush1.bf16.msra.mxu0 0
      %298 = vmatprep.subr.bf16.mxu0 0
      %299 = vmatpush1.bf16.msra.mxu0 0
      %300 = vmatprep.subr.bf16.mxu0 0
      %301 = vmatpush1.bf16.msra.mxu0 0
      %302 = vmatprep.subr.bf16.mxu0 0
      %303 = vmatpush1.bf16.msra.mxu0 0
      %304 = vmatprep.subr.bf16.mxu0 0
      %305 = vmatpush1.bf16.msra.mxu0 0
      %306 = vmatprep.subr.bf16.mxu0 0
      %307 = vmatpush1.bf16.msra.mxu0 0
      %308 = vmatprep.mubr.bf16.mxu0 0
      %309 = vmatmul.mubr.bf16.gmra.mrb[0].mxu0 %v212
      %v310 = vpop.f32.mrb[0].mxu0
      %v311 = vadd.f32 0.0, %v310
      %v312 = vpop.f32.mrb[0].mxu0
      %v313 = vpop.f32.mrb[0].mxu0
      %v314 = vadd.f32 0.0, %v313
      %v315 = vpop.f32.mrb[0].mxu0
      %316 = vmatprep.mubr.bf16.mxu0 0
      %317 = vmatmul.mubr.bf16.gmra.mrb[0].mxu0 %v213
      %v318 = vpop.f32.mrb[0].mxu0
      %v319 = vadd.f32 0.0, %v318
      %v320 = vpop.f32.mrb[0].mxu0
      %v321 = vpop.f32.mrb[0].mxu0
      %v322 = vadd.f32 0.0, %v321
      %v323 = vpop.f32.mrb[0].mxu0
      %324 = vmatprep.mubr.bf16.mxu0 0
      %325 = vmatmul.mubr.bf16.gmra.mrb[0].mxu0 %v214
      %v326 = vpop.f32.mrb[0].mxu0
      %v327 = vadd.f32 0.0, %v326
      %v328 = vpop.f32.mrb[0].mxu0
      %v329 = vpop.f32.mrb[0].mxu0
      %v330 = vadd.f32 0.0, %v329
      %v331 = vpop.f32.mrb[0].mxu0
      %332 = vmatprep.mubr.bf16.mxu0 0
      %333 = vmatmul.mubr.bf16.gmra.mrb[0].mxu0 %v215
      %v334 = vpop.f32.mrb[0].mxu0
      %v335 = vadd.f32 0.0, %v334
      %v336 = vpop.f32.mrb[0].mxu0
      %v337 = vpop.f32.mrb[0].mxu0
      %v338 = vadd.f32 0.0, %v337
      %v339 = vpop.f32.mrb[0].mxu0
      %340 = vmatprep.mubr.bf16.mxu0 0
      %341 = vmatmul.mubr.bf16.gmra.mrb[0].mxu0 %v216
      %v342 = vpop.f32.mrb[0].mxu0
      %v343 = vadd.f32 0.0, %v342
      %v344 = vpop.f32.mrb[0].mxu0
      %v345 = vpop.f32.mrb[0].mxu0
      %v346 = vadd.f32 0.0, %v345
      %v347 = vpop.f32.mrb[0].mxu0
      %348 = vmatprep.mubr.bf16.mxu0 0
      %349 = vmatmul.mubr.bf16.gmra.mrb[0].mxu0 %v217
      %v350 = vpop.f32.mrb[0].mxu0
      %v351 = vadd.f32 0.0, %v350
      %v352 = vpop.f32.mrb[0].mxu0
      %v353 = vpop.f32.mrb[0].mxu0
      %v354 = vadd.f32 0.0, %v353
      %v355 = vpop.f32.mrb[0].mxu0
      %356 = vmatprep.mubr.bf16.mxu0 0
      %357 = vmatmul.mubr.bf16.gmra.mrb[0].mxu0 %v218
      %v358 = vpop.f32.mrb[0].mxu0
      %v359 = vadd.f32 0.0, %v358
      %v360 = vpop.f32.mrb[0].mxu0
      %v361 = vpop.f32.mrb[0].mxu0
      %v362 = vadd.f32 0.0, %v361
      %v363 = vpop.f32.mrb[0].mxu0
      %364 = vmatprep.mubr.bf16.mxu0 0
      %365 = vmatmul.mubr.bf16.gmra.mrb[0].mxu0 %v219
      %v366 = vpop.f32.mrb[0].mxu0
      %v367 = vadd.f32 0.0, %v366
      %v368 = vpop.f32.mrb[0].mxu0
      %v369 = vpop.f32.mrb[0].mxu0
      %v370 = vadd.f32 0.0, %v369
      %v371 = vpop.f32.mrb[0].mxu0
      %372 = vdwg.mxu0
      %v373 = vpack.c.bf16 %v314, %v311
      %v374 = vpack.c.bf16 %v322, %v319
      %v375 = vpack.c.bf16 %v330, %v327
      %v376 = vpack.c.bf16 %v338, %v335
      %v377 = vpack.c.bf16 %v346, %v343
      %v378 = vpack.c.bf16 %v354, %v351
      %v379 = vpack.c.bf16 %v362, %v359
      %v380 = vpack.c.bf16 %v370, %v367
      %v389 = vunpack.c.l.b16 %v373
      %v390 = vunpack.c.h.b16 %v373
      %v391 = vunpack.c.l.b16 %v374
      %v392 = vunpack.c.h.b16 %v374
      %v393 = vunpack.c.l.b16 %v375
      %v394 = vunpack.c.h.b16 %v375
      %v395 = vunpack.c.l.b16 %v376
      %v396 = vunpack.c.h.b16 %v376
      %v397 = vunpack.c.l.b16 %v377
      %v398 = vunpack.c.h.b16 %v377
      %v399 = vunpack.c.l.b16 %v378
      %v400 = vunpack.c.h.b16 %v378
      %v401 = vunpack.c.l.b16 %v379
      %v402 = vunpack.c.h.b16 %v379
      %v403 = vunpack.c.l.b16 %v380
      %v404 = vunpack.c.h.b16 %v380
      %v405 = vpack.c.b16 %v389, %v389
      %v406 = vpack.c.b16 %v390, %v390
      %v407 = vpack.c.b16 %v391, %v391
      %v408 = vpack.c.b16 %v392, %v392
      %v409 = vpack.c.b16 %v393, %v393
      %v410 = vpack.c.b16 %v394, %v394
      %v411 = vpack.c.b16 %v395, %v395
      %v412 = vpack.c.b16 %v396, %v396
      %v413 = vpack.c.b16 %v397, %v397
      %v414 = vpack.c.b16 %v398, %v398
      %v415 = vpack.c.b16 %v399, %v399
      %v416 = vpack.c.b16 %v400, %v400
      %v417 = vpack.c.b16 %v401, %v401
      %v418 = vpack.c.b16 %v402, %v402
      %v419 = vpack.c.b16 %v403, %v403
      %v420 = vpack.c.b16 %v404, %v404
      %437 = vst [vmem:[%s145] sm:$0xf] %v405
      %438 = vst [vmem:[%s145 + $0x4] sm:$0xf] %v406
      %439 = vst [vmem:[%s145 + $0x8] sm:$0xf] %v407
      %440 = vst [vmem:[%s145 + $0xc] sm:$0xf] %v408
      %441 = vst [vmem:[%s145 + $0x10] sm:$0xf] %v409
      %442 = vst [vmem:[%s145 + $0x14] sm:$0xf] %v410
      %443 = vst [vmem:[%s145 + $0x18] sm:$0xf] %v411
      %444 = vst [vmem:[%s145 + $0x1c] sm:$0xf] %v412
      %445 = vst [vmem:[%s145 + $0x20] sm:$0xf] %v413
      %446 = vst [vmem:[%s145 + $0x24] sm:$0xf] %v414
      %447 = vst [vmem:[%s145 + $0x28] sm:$0xf] %v415
      %448 = vst [vmem:[%s145 + $0x2c] sm:$0xf] %v416
      %449 = vst [vmem:[%s145 + $0x30] sm:$0xf] %v417
      %450 = vst [vmem:[%s145 + $0x34] sm:$0xf] %v418
      %451 = vst [vmem:[%s145 + $0x38] sm:$0xf] %v419
      %452 = vst [vmem:[%s145 + $0x3c] sm:$0xf] %v420
      %s453 = smul.u32 16, %s13
      %p454 = scmp.lt.s32.totalorder %s453, 47
      %s455 = scalar_select %p454, %s453, 47
      %s456 = smul.addr %s455, 4
      %s457 = scalar_lea.vmem %s2, %s456
      // Predicated region
      $region29: #{gcn_node_forward.7} parent=27 // pred_check
        %p458 = pneg %p78
      $region30: #{gcn_node_forward.7} parent=27 // pred_check_branch
        %460 = sbr.rel (%p458) target = $region32
      $region31: #{gcn_node_forward.7} parent=27 // pred_region
        %s461 = smul.u32 16, %s13
      $region32: #{gcn_node_forward.7} parent=27 // pred_fallthru
        _
    $region28: #{gcn_node_forward.7} parent=5 // pred_fallthru
      _
    %p462 = scmp.le.s32.totalorder 2, %s8
    // Predicated region
    $region33: #{gcn_node_forward.7} parent=5 // pred_check
      %p463 = pneg %p462
    $region34: #{gcn_node_forward.7} parent=5 // pred_check_branch
      %465 = sbr.rel (%p463) target = $region36
    $region35: #{gcn_node_forward.7} parent=5 // pred_region
      %s466 = ssub.s32 %s8, 2
      // Predicated region
      $region37: #{gcn_node_forward.7} parent=35 // pred_check
        %p467 = pneg %p84
      $region38: #{gcn_node_forward.7} parent=35 // pred_check_branch
        %469 = sbr.rel (%p467) target = $region40
      $region39: #{gcn_node_forward.7} parent=35 // pred_region
        %s470 = smul.u32 16, %s14
        %p471 = scmp.lt.s32.totalorder %s470, 47
        %s472 = scalar_select %p471, %s470, 47
        %s473 = smul.addr %s472, 4
        %s474 = scalar_lea.vmem %s2, %s473
      $region40: #{gcn_node_forward.7} parent=35 // pred_fallthru
        _
    $region36: #{gcn_node_forward.7} parent=5 // pred_fallthru
      _
  $region6: #{gcn_node_forward.7} parent=0 // loop_footer
    %s12 = sadd.s32 1, %s8
  $region7: #{gcn_node_forward.7} parent=0 // loop_footer_branch
    %7 = sbr.rel target = $region3
  $region8: #{gcn_node_forward.7} parent=0 // loop_exit
    _

// kernel: gcn_node_forward.13
$region0: #{gcn_node_forward.13}
  #allocation0 [shape = 'u32[]', space=smem, size = 0x4, offset = 0x4, fixed_abs, tag = 'smem constant byte address 0x4 - core index']
  #allocation1 [shape = 'u32[144,128]{1,0:T(1,128)}', space=vmem, size = 0x12000, scoped, tag = 'internal scratch']
  %s0 = inlined_call_operand.vmem [shape: bf16[384,128], index: 0, kind: input, shape index: {}]
  %s1 = inlined_call_operand.vmem [shape: bf16[128,128], index: 1, kind: input, shape index: {}]
  %s2 = inlined_call_operand.vmem [shape: f32[1,128], index: 2, kind: input, shape index: {}]
  %s3 = inlined_call_operand.vmem [shape: f32[384,128], index: 3, kind: output, shape index: {}]
  %s4 = sld [smem:[#allocation0]]
  $region45: #{gcn_node_forward.13} parent=0
    _
  %s6 = ssub.s32 1, %s4
  %s7 = scalar_select 0, %s6, %s4
  loop: start=0, step=1, limit=5
  $region2: #{gcn_node_forward.13} parent=0 // loop_pre_header
    _
  $region3: #{gcn_node_forward.13} parent=0 // loop_header
    %s9 = sphi 0, %s13
    %p10 = scmp.ge.s32.totalorder %s9, 5
    %s19 = sphi 0, %s21
    %s22 = sphi 0, %s19
    %s23 = sphi 0, %s22
    %s39 = sphi 0, %s23
    %s43 = sphi 0, %s43
    %s45 = sphi 0, %s43
    %s46 = sphi 0, %s45
    %s60 = sphi 0, %s46
    %s64 = sphi 0, %s64
    %s66 = sphi 0, %s64
    %s67 = sphi 0, %s66
    %s81 = sphi 0, %s67
    %s87 = sphi 0, %s89
    %s90 = sphi 0, %s87
    %s91 = sphi 0, %s90
    %s107 = sphi 0, %s91
  $region4: #{gcn_node_forward.13} parent=0 // loop_header_branch
    %12 = sbr.rel (%p10) target = $region8
  $region5: #{gcn_node_forward.13} parent=0 // loop_body
    %s14 = ssub.s32 %s9, 1
    %s15 = ssub.s32 %s9, 2
    %s16 = sadd.s32 %s9, 1
    %s17 = ssub.s32 %s9, %s16
    %p18 = scmp.eq.s32.totalorder %s17, 0
    %s20 = sadd.s32 %s19, 1
    %s21 = scalar_select %p18, %s19, %s20
    %p24 = pneg %p18
    %p25 = scmp.eq.s32.totalorder %s9, 2
    %p26 = por %p24, %p25
    %p27 = scmp.ne.s32.totalorder %s19, %s22
    %p28 = scmp.eq.s32.totalorder %s9, 0
    %p29 = por %p27, %p28
    %p30 = scmp.ne.s32.totalorder %s19, %s22
    %p31 = scmp.eq.s32.totalorder %s14, 2
    %p32 = por %p30, %p31
    %p33 = scmp.ne.s32.totalorder %s22, %s23
    %p34 = scmp.eq.s32.totalorder %s14, 0
    %p35 = por %p33, %p34
    %p36 = scmp.ne.s32.totalorder %s22, %s23
    %p37 = scmp.eq.s32.totalorder %s15, 2
    %p38 = por %p36, %p37
    %p40 = scmp.ne.s32.totalorder %s23, %s39
    %p41 = scmp.eq.s32.totalorder %s15, 0
    %p42 = por %p40, %p41
    %s44 = sadd.s32 %s43, 1
    %p47 = scmp.eq.s32.totalorder %s9, 2
    %p48 = scmp.ne.s32.totalorder %s43, %s45
    %p49 = scmp.eq.s32.totalorder %s9, 0
    %p50 = por %p48, %p49
    %p51 = scmp.ne.s32.totalorder %s43, %s45
    %p52 = scmp.eq.s32.totalorder %s14, 2
    %p53 = por %p51, %p52
    %p54 = scmp.ne.s32.totalorder %s45, %s46
    %p55 = scmp.eq.s32.totalorder %s14, 0
    %p56 = por %p54, %p55
    %p57 = scmp.ne.s32.totalorder %s45, %s46
    %p58 = scmp.eq.s32.totalorder %s15, 2
    %p59 = por %p57, %p58
    %p61 = scmp.ne.s32.totalorder %s46, %s60
    %p62 = scmp.eq.s32.totalorder %s15, 0
    %p63 = por %p61, %p62
    %s65 = sadd.s32 %s64, 1
    %p68 = scmp.eq.s32.totalorder %s9, 2
    %p69 = scmp.ne.s32.totalorder %s64, %s66
    %p70 = scmp.eq.s32.totalorder %s9, 0
    %p71 = por %p69, %p70
    %p72 = scmp.ne.s32.totalorder %s64, %s66
    %p73 = scmp.eq.s32.totalorder %s14, 2
    %p74 = por %p72, %p73
    %p75 = scmp.ne.s32.totalorder %s66, %s67
    %p76 = scmp.eq.s32.totalorder %s14, 0
    %p77 = por %p75, %p76
    %p78 = scmp.ne.s32.totalorder %s66, %s67
    %p79 = scmp.eq.s32.totalorder %s15, 2
    %p80 = por %p78, %p79
    %p82 = scmp.ne.s32.totalorder %s67, %s81
    %p83 = scmp.eq.s32.totalorder %s15, 0
    %p84 = por %p82, %p83
    %s85 = ssub.s32 %s9, %s16
    %p86 = scmp.eq.s32.totalorder %s85, 0
    %s88 = sadd.s32 %s87, 1
    %s89 = scalar_select %p86, %s87, %s88
    %p92 = pneg %p86
    %p93 = scmp.eq.s32.totalorder %s9, 2
    %p94 = por %p92, %p93
    %p95 = scmp.ne.s32.totalorder %s87, %s90
    %p96 = scmp.eq.s32.totalorder %s9, 0
    %p97 = por %p95, %p96
    %p98 = scmp.ne.s32.totalorder %s87, %s90
    %p99 = scmp.eq.s32.totalorder %s14, 2
    %p100 = por %p98, %p99
    %p101 = scmp.ne.s32.totalorder %s90, %s91
    %p102 = scmp.eq.s32.totalorder %s14, 0
    %p103 = por %p101, %p102
    %p104 = scmp.ne.s32.totalorder %s90, %s91
    %p105 = scmp.eq.s32.totalorder %s15, 2
    %p106 = por %p104, %p105
    %p108 = scmp.ne.s32.totalorder %s91, %s107
    %p109 = scmp.eq.s32.totalorder %s15, 0
    %p110 = por %p108, %p109
    %p111 = scmp.le.s32.totalorder 1, %s9
    %p112 = scmp.lt.s32.totalorder %s9, 4
    %p113 = pnand %p111, %p112
    %p114 = pneg %p113
    // Predicated region
    $region9: #{gcn_node_forward.13} parent=5 // pred_check
      _
    $region10: #{gcn_node_forward.13} parent=5 // pred_check_branch
      %116 = sbr.rel (%p113) target = $region12
    $region11: #{gcn_node_forward.13} parent=5 // pred_region
      %s117 = ssub.s32 %s9, 1
      // Predicated region
      $region13: #{gcn_node_forward.13} parent=11 // pred_check
        %p118 = pneg %p56
      $region14: #{gcn_node_forward.13} parent=11 // pred_check_branch
        %120 = sbr.rel (%p118) target = $region16
      $region15: #{gcn_node_forward.13} parent=11 // pred_region
        _
      $region16: #{gcn_node_forward.13} parent=11 // pred_fallthru
        _
      // Predicated region
      $region17: #{gcn_node_forward.13} parent=11 // pred_check
        %p121 = pneg %p77
      $region18: #{gcn_node_forward.13} parent=11 // pred_check_branch
        %123 = sbr.rel (%p121) target = $region20
      $region19: #{gcn_node_forward.13} parent=11 // pred_region
        _
      $region20: #{gcn_node_forward.13} parent=11 // pred_fallthru
        _
    $region12: #{gcn_node_forward.13} parent=5 // pred_fallthru
      _
    %p124 = scmp.lt.s32.totalorder %s9, 3
    // Predicated region
    $region21: #{gcn_node_forward.13} parent=5 // pred_check
      %p125 = pneg %p124
    $region22: #{gcn_node_forward.13} parent=5 // pred_check_branch
      %127 = sbr.rel (%p125) target = $region24
    $region23: #{gcn_node_forward.13} parent=5 // pred_region
      // Predicated region
      $region25: #{gcn_node_forward.13} parent=23 // pred_check
        %p128 = pneg %p29
      $region26: #{gcn_node_forward.13} parent=23 // pred_check_branch
        %130 = sbr.rel (%p128) target = $region28
      $region27: #{gcn_node_forward.13} parent=23 // pred_region
        %s131 = smul.u32 16, %s9
        %p132 = scmp.lt.s32.totalorder %s131, 47
        %s133 = scalar_select %p132, %s131, 47
        %s134 = smul.addr %s133, 4
        %s135 = scalar_lea.vmem %s0, %s134
        %s136 = smul.u32 16, %s9
      $region28: #{gcn_node_forward.13} parent=23 // pred_fallthru
        _
    $region24: #{gcn_node_forward.13} parent=5 // pred_fallthru
      _
    %p137 = scmp.le.s32.totalorder 1, %s9
    %p138 = scmp.lt.s32.totalorder %s9, 4
    %p139 = pnand %p137, %p138
    %p140 = pneg %p139
    // Predicated region
    $region29: #{gcn_node_forward.13} parent=5 // pred_check
      _
    $region30: #{gcn_node_forward.13} parent=5 // pred_check_branch
      %142 = sbr.rel (%p139) target = $region32
    $region31: #{gcn_node_forward.13} parent=5 // pred_region
      %s143 = ssub.s32 %s9, 1
      %s144 = smul.u32 16, %s14
      %p145 = scmp.lt.s32.totalorder %s144, 47
      %s146 = scalar_select %p145, %s144, 47
      %s147 = smul.addr %s146, 4
      %s148 = scalar_lea.vmem %s0, %s147
      %p149 = pneg %p35
      %p150 = pneg %p32
      %p151 = pneg %p56
      %p152 = pneg %p53
      %p153 = pneg %p77
      %p154 = pneg %p74
      %p155 = pneg %p103
      %p156 = pneg %p100
      %s157 = smul.u32 16, %s14
      %p158 = scmp.lt.s32.totalorder %s157, 47
      %s159 = scalar_select %p158, %s157, 47
      %s160 = smul.addr %s159, 8
      %s161 = scalar_lea.vmem %s3, %s160
      %s162 = smul.u32 16, %s14
      %p163 = scmp.lt.s32.totalorder %s162, 47
      %s164 = scalar_select %p163, %s162, 47
      %s165 = smul.addr %s164, 4
      %s166 = scalar_lea.vmem %s0, %s165
      %s167 = smul.u32 16, %s14
      %s168 = smul.u32 16, %s14
      %p169 = scmp.lt.s32.totalorder %s168, 47
      %s170 = scalar_select %p169, %s168, 47
      %s171 = smul.addr %s170, 8
      %s172 = scalar_lea.vmem %s3, %s171
      %s173 = smul.u32 16, %s14
      %v175 = vld [vmem:[%s166] sm:$0xf]
      %v176 = vld [vmem:[%s166 + $0x4] sm:$0xf]
      %v177 = vld [vmem:[%s166 + $0x8] sm:$0xf]
      %v178 = vld [vmem:[%s166 + $0xc] sm:$0xf]
      %v179 = vld [vmem:[%s166 + $0x10] sm:$0xf]
      %v180 = vld [vmem:[%s166 + $0x14] sm:$0xf]
      %v181 = vld [vmem:[%s166 + $0x18] sm:$0xf]
      %v182 = vld [vmem:[%s166 + $0x1c] sm:$0xf]
      %v183 = vld [vmem:[%s166 + $0x20] sm:$0xf]
      %v184 = vld [vmem:[%s166 + $0x24] sm:$0xf]
      %v185 = vld [vmem:[%s166 + $0x28] sm:$0xf]
      %v186 = vld [vmem:[%s166 + $0x2c] sm:$0xf]
      %v187 = vld [vmem:[%s166 + $0x30] sm:$0xf]
      %v188 = vld [vmem:[%s166 + $0x34] sm:$0xf]
      %v189 = vld [vmem:[%s166 + $0x38] sm:$0xf]
      %v190 = vld [vmem:[%s166 + $0x3c] sm:$0xf]
      %v191 = vld [vmem:[%s1] sm:$0xf]
      %v192 = vld [vmem:[%s1 + $0x4] sm:$0xf]
      %v193 = vld [vmem:[%s1 + $0x8] sm:$0xf]
      %v194 = vld [vmem:[%s1 + $0xc] sm:$0xf]
      %v195 = vld [vmem:[%s1 + $0x10] sm:$0xf]
      %v196 = vld [vmem:[%s1 + $0x14] sm:$0xf]
      %v197 = vld [vmem:[%s1 + $0x18] sm:$0xf]
      %v198 = vld [vmem:[%s1 + $0x1c] sm:$0xf]
      %v199 = vld [vmem:[%s1 + $0x20] sm:$0xf]
      %v200 = vld [vmem:[%s1 + $0x24] sm:$0xf]
      %v201 = vld [vmem:[%s1 + $0x28] sm:$0xf]
      %v202 = vld [vmem:[%s1 + $0x2c] sm:$0xf]
      %v203 = vld [vmem:[%s1 + $0x30] sm:$0xf]
      %v204 = vld [vmem:[%s1 + $0x34] sm:$0xf]
      %v205 = vld [vmem:[%s1 + $0x38] sm:$0xf]
      %v206 = vld [vmem:[%s1 + $0x3c] sm:$0xf]
      %v207 = vld [vmem:[%s2] sm:$0x1]
      %v209 = vlaneseq
      %v210 = vshrl.u32 %v209, 7
      %v211 = vsub.s32 0, %v210
      %v212 = vrot.slane %v207, %v211
      %v230 = vunpack.c.l.b16 %v175
      %v231 = vunpack.c.l.b16 %v176
      %v232 = vunpack.c.l.b16 %v177
      %v233 = vunpack.c.l.b16 %v178
      %v234 = vunpack.c.l.b16 %v179
      %v235 = vunpack.c.l.b16 %v180
      %v236 = vunpack.c.l.b16 %v181
      %v237 = vunpack.c.l.b16 %v182
      %v238 = vunpack.c.l.b16 %v183
      %v239 = vunpack.c.l.b16 %v184
      %v240 = vunpack.c.l.b16 %v185
      %v241 = vunpack.c.l.b16 %v186
      %v242 = vunpack.c.l.b16 %v187
      %v243 = vunpack.c.l.b16 %v188
      %v244 = vunpack.c.l.b16 %v189
      %v245 = vunpack.c.l.b16 %v190
      %v246 = vpack.c.b16 %v231, %v230
      %v247 = vpack.c.b16 %v233, %v232
      %v248 = vpack.c.b16 %v235, %v234
      %v249 = vpack.c.b16 %v237, %v236
      %v250 = vpack.c.b16 %v239, %v238
      %v251 = vpack.c.b16 %v241, %v240
      %v252 = vpack.c.b16 %v243, %v242
      %v253 = vpack.c.b16 %v245, %v244
      %v278 = vunpack.c.l.b16 %v191
      %v279 = vunpack.c.l.b16 %v192
      %v280 = vunpack.c.l.b16 %v193
      %v281 = vunpack.c.l.b16 %v194
      %v282 = vunpack.c.l.b16 %v195
      %v283 = vunpack.c.l.b16 %v196
      %v284 = vunpack.c.l.b16 %v197
      %v285 = vunpack.c.l.b16 %v198
      %v286 = vunpack.c.l.b16 %v199
      %v287 = vunpack.c.l.b16 %v200
      %v288 = vunpack.c.l.b16 %v201
      %v289 = vunpack.c.l.b16 %v202
      %v290 = vunpack.c.l.b16 %v203
      %v291 = vunpack.c.l.b16 %v204
      %v292 = vunpack.c.l.b16 %v205
      %v293 = vunpack.c.l.b16 %v206
      %v294 = vpack.c.b16 %v279, %v278
      %v295 = vpack.c.b16 %v281, %v280
      %v296 = vpack.c.b16 %v283, %v282
      %v297 = vpack.c.b16 %v285, %v284
      %v298 = vpack.c.b16 %v287, %v286
      %v299 = vpack.c.b16 %v289, %v288
      %v300 = vpack.c.b16 %v291, %v290
      %v301 = vpack.c.b16 %v293, %v292
      %310 = vmatprep.subr.bf16.mxu0 0
      %311 = vmatpush1.bf16.msra.mxu0 %v294
      %312 = vmatprep.subr.bf16.mxu0 0
      %313 = vmatpush1.bf16.msra.mxu0 %v295
      %314 = vmatprep.subr.bf16.mxu0 0
      %315 = vmatpush1.bf16.msra.mxu0 %v296
      %316 = vmatprep.subr.bf16.mxu0 0
      %317 = vmatpush1.bf16.msra.mxu0 %v297
      %318 = vmatprep.subr.bf16.mxu0 0
      %319 = vmatpush1.bf16.msra.mxu0 %v298
      %320 = vmatprep.subr.bf16.mxu0 0
      %321 = vmatpush1.bf16.msra.mxu0 %v299
      %322 = vmatprep.subr.bf16.mxu0 0
      %323 = vmatpush1.bf16.msra.mxu0 %v300
      %324 = vmatprep.subr.bf16.mxu0 0
      %325 = vmatpush1.bf16.msra.mxu0 %v301
      %326 = vmatprep.subr.bf16.mxu0 0
      %327 = vmatpush1.bf16.msra.mxu0 0
      %328 = vmatprep.subr.bf16.mxu0 0
      %329 = vmatpush1.bf16.msra.mxu0 0
      %330 = vmatprep.subr.bf16.mxu0 0
      %331 = vmatpush1.bf16.msra.mxu0 0
      %332 = vmatprep.subr.bf16.mxu0 0
      %333 = vmatpush1.bf16.msra.mxu0 0
      %334 = vmatprep.subr.bf16.mxu0 0
      %335 = vmatpush1.bf16.msra.mxu0 0
      %336 = vmatprep.subr.bf16.mxu0 0
      %337 = vmatpush1.bf16.msra.mxu0 0
      %338 = vmatprep.subr.bf16.mxu0 0
      %339 = vmatpush1.bf16.msra.mxu0 0
      %340 = vmatprep.subr.bf16.mxu0 0
      %341 = vmatpush1.bf16.msra.mxu0 0
      %342 = vmatprep.mubr.bf16.mxu0 0
      %343 = vmatmul.mubr.bf16.gmra.mrb[0].mxu0 %v246
      %v344 = vpop.f32.mrb[0].mxu0
      %v345 = vadd.f32 %v212, %v344
      %v346 = vpop.f32.mrb[0].mxu0
      %v347 = vpop.f32.mrb[0].mxu0
      %v348 = vadd.f32 %v212, %v347
      %v349 = vpop.f32.mrb[0].mxu0
      %350 = vmatprep.mubr.bf16.mxu0 0
      %351 = vmatmul.mubr.bf16.gmra.mrb[0].mxu0 %v247
      %v352 = vpop.f32.mrb[0].mxu0
      %v353 = vadd.f32 %v212, %v352
      %v354 = vpop.f32.mrb[0].mxu0
      %v355 = vpop.f32.mrb[0].mxu0
      %v356 = vadd.f32 %v212, %v355
      %v357 = vpop.f32.mrb[0].mxu0
      %358 = vmatprep.mubr.bf16.mxu0 0
      %359 = vmatmul.mubr.bf16.gmra.mrb[0].mxu0 %v248
      %v360 = vpop.f32.mrb[0].mxu0
      %v361 = vadd.f32 %v212, %v360
      %v362 = vpop.f32.mrb[0].mxu0
      %v363 = vpop.f32.mrb[0].mxu0
      %v364 = vadd.f32 %v212, %v363
      %v365 = vpop.f32.mrb[0].mxu0
      %366 = vmatprep.mubr.bf16.mxu0 0
      %367 = vmatmul.mubr.bf16.gmra.mrb[0].mxu0 %v249
      %v368 = vpop.f32.mrb[0].mxu0
      %v369 = vadd.f32 %v212, %v368
      %v370 = vpop.f32.mrb[0].mxu0
      %v371 = vpop.f32.mrb[0].mxu0
      %v372 = vadd.f32 %v212, %v371
      %v373 = vpop.f32.mrb[0].mxu0
      %374 = vmatprep.mubr.bf16.mxu0 0
      %375 = vmatmul.mubr.bf16.gmra.mrb[0].mxu0 %v250
      %v376 = vpop.f32.mrb[0].mxu0
      %v377 = vadd.f32 %v212, %v376
      %v378 = vpop.f32.mrb[0].mxu0
      %v379 = vpop.f32.mrb[0].mxu0
      %v380 = vadd.f32 %v212, %v379
      %v381 = vpop.f32.mrb[0].mxu0
      %382 = vmatprep.mubr.bf16.mxu0 0
      %383 = vmatmul.mubr.bf16.gmra.mrb[0].mxu0 %v251
      %v384 = vpop.f32.mrb[0].mxu0
      %v385 = vadd.f32 %v212, %v384
      %v386 = vpop.f32.mrb[0].mxu0
      %v387 = vpop.f32.mrb[0].mxu0
      %v388 = vadd.f32 %v212, %v387
      %v389 = vpop.f32.mrb[0].mxu0
      %390 = vmatprep.mubr.bf16.mxu0 0
      %391 = vmatmul.mubr.bf16.gmra.mrb[0].mxu0 %v252
      %v392 = vpop.f32.mrb[0].mxu0
      %v393 = vadd.f32 %v212, %v392
      %v394 = vpop.f32.mrb[0].mxu0
      %v395 = vpop.f32.mrb[0].mxu0
      %v396 = vadd.f32 %v212, %v395
      %v397 = vpop.f32.mrb[0].mxu0
      %398 = vmatprep.mubr.bf16.mxu0 0
      %399 = vmatmul.mubr.bf16.gmra.mrb[0].mxu0 %v253
      %v400 = vpop.f32.mrb[0].mxu0
      %v401 = vadd.f32 %v212, %v400
      %v402 = vpop.f32.mrb[0].mxu0
      %v403 = vpop.f32.mrb[0].mxu0
      %v404 = vadd.f32 %v212, %v403
      %v405 = vpop.f32.mrb[0].mxu0
      %406 = vdwg.mxu0
      %407 = vst [vmem:[%s172] sm:$0xff] %v345
      %408 = vst [vmem:[%s172 + $0x8] sm:$0xff] %v348
      %409 = vst [vmem:[%s172 + $0x10] sm:$0xff] %v353
      %410 = vst [vmem:[%s172 + $0x18] sm:$0xff] %v356
      %411 = vst [vmem:[%s172 + $0x20] sm:$0xff] %v361
      %412 = vst [vmem:[%s172 + $0x28] sm:$0xff] %v364
      %413 = vst [vmem:[%s172 + $0x30] sm:$0xff] %v369
      %414 = vst [vmem:[%s172 + $0x38] sm:$0xff] %v372
      %415 = vst [vmem:[%s172 + $0x40] sm:$0xff] %v377
      %416 = vst [vmem:[%s172 + $0x48] sm:$0xff] %v380
      %417 = vst [vmem:[%s172 + $0x50] sm:$0xff] %v385
      %418 = vst [vmem:[%s172 + $0x58] sm:$0xff] %v388
      %419 = vst [vmem:[%s172 + $0x60] sm:$0xff] %v393
      %420 = vst [vmem:[%s172 + $0x68] sm:$0xff] %v396
      %421 = vst [vmem:[%s172 + $0x70] sm:$0xff] %v401
      %422 = vst [vmem:[%s172 + $0x78] sm:$0xff] %v404
      %s423 = smul.u32 16, %s14
      %p424 = scmp.lt.s32.totalorder %s423, 47
      %s425 = scalar_select %p424, %s423, 47
      %s426 = smul.addr %s425, 8
      %s427 = scalar_lea.vmem %s3, %s426
      // Predicated region
      $region33: #{gcn_node_forward.13} parent=31 // pred_check
        %p428 = pneg %p100
      $region34: #{gcn_node_forward.13} parent=31 // pred_check_branch
        %430 = sbr.rel (%p428) target = $region36
      $region35: #{gcn_node_forward.13} parent=31 // pred_region
        %s431 = smul.u32 16, %s14
      $region36: #{gcn_node_forward.13} parent=31 // pred_fallthru
        _
    $region32: #{gcn_node_forward.13} parent=5 // pred_fallthru
      _
    %p432 = scmp.le.s32.totalorder 2, %s9
    // Predicated region
    $region37: #{gcn_node_forward.13} parent=5 // pred_check
      %p433 = pneg %p432
    $region38: #{gcn_node_forward.13} parent=5 // pred_check_branch
      %435 = sbr.rel (%p433) target = $region40
    $region39: #{gcn_node_forward.13} parent=5 // pred_region
      %s436 = ssub.s32 %s9, 2
      // Predicated region
      $region41: #{gcn_node_forward.13} parent=39 // pred_check
        %p437 = pneg %p106
      $region42: #{gcn_node_forward.13} parent=39 // pred_check_branch
        %439 = sbr.rel (%p437) target = $region44
      $region43: #{gcn_node_forward.13} parent=39 // pred_region
        %s440 = smul.u32 16, %s15
        %p441 = scmp.lt.s32.totalorder %s440, 47
        %s442 = scalar_select %p441, %s440, 47
        %s443 = smul.addr %s442, 8
        %s444 = scalar_lea.vmem %s3, %s443
      $region44: #{gcn_node_forward.13} parent=39 // pred_fallthru
        _
    $region40: #{gcn_node_forward.13} parent=5 // pred_fallthru
      _
  $region6: #{gcn_node_forward.13} parent=0 // loop_footer
    %s13 = sadd.s32 1, %s9
  $region7: #{gcn_node_forward.13} parent=0 // loop_footer_branch
    %8 = sbr.rel target = $region3
  $region8: #{gcn_node_forward.13} parent=0 // loop_exit
    _

// kernel: gcn_node_forward.8
$region0: #{gcn_node_forward.8}
  #allocation0 [shape = 'u32[]', space=smem, size = 0x4, offset = 0x4, fixed_abs, tag = 'smem constant byte address 0x4 - core index']
  #allocation1 [shape = 'u32[144,128]{1,0:T(1,128)}', space=vmem, size = 0x12000, scoped, tag = 'internal scratch']
  %s0 = inlined_call_operand.vmem [shape: bf16[384,384], index: 0, kind: input, shape index: {}]
  %s1 = inlined_call_operand.vmem [shape: bf16[384,128], index: 1, kind: input, shape index: {}]
  %s2 = inlined_call_operand.vmem [shape: f32[1,128], index: 2, kind: input, shape index: {}]
  %s3 = inlined_call_operand.vmem [shape: bf16[384,128], index: 3, kind: output, shape index: {}]
  %s4 = sld [smem:[#allocation0]]
  $region45: #{gcn_node_forward.8} parent=0
    _
  %s6 = ssub.s32 1, %s4
  %s7 = scalar_select 0, %s6, %s4
  loop: start=0, step=1, limit=5
  $region2: #{gcn_node_forward.8} parent=0 // loop_pre_header
    _
  $region3: #{gcn_node_forward.8} parent=0 // loop_header
    %s9 = sphi 0, %s13
    %p10 = scmp.ge.s32.totalorder %s9, 5
    %s19 = sphi 0, %s21
    %s22 = sphi 0, %s19
    %s23 = sphi 0, %s22
    %s39 = sphi 0, %s23
    %s43 = sphi 0, %s43
    %s45 = sphi 0, %s43
    %s46 = sphi 0, %s45
    %s60 = sphi 0, %s46
    %s64 = sphi 0, %s64
    %s66 = sphi 0, %s64
    %s67 = sphi 0, %s66
    %s81 = sphi 0, %s67
    %s87 = sphi 0, %s89
    %s90 = sphi 0, %s87
    %s91 = sphi 0, %s90
    %s107 = sphi 0, %s91
  $region4: #{gcn_node_forward.8} parent=0 // loop_header_branch
    %12 = sbr.rel (%p10) target = $region8
  $region5: #{gcn_node_forward.8} parent=0 // loop_body
    %s14 = ssub.s32 %s9, 1
    %s15 = ssub.s32 %s9, 2
    %s16 = sadd.s32 %s9, 1
    %s17 = ssub.s32 %s9, %s16
    %p18 = scmp.eq.s32.totalorder %s17, 0
    %s20 = sadd.s32 %s19, 1
    %s21 = scalar_select %p18, %s19, %s20
    %p24 = pneg %p18
    %p25 = scmp.eq.s32.totalorder %s9, 2
    %p26 = por %p24, %p25
    %p27 = scmp.ne.s32.totalorder %s19, %s22
    %p28 = scmp.eq.s32.totalorder %s9, 0
    %p29 = por %p27, %p28
    %p30 = scmp.ne.s32.totalorder %s19, %s22
    %p31 = scmp.eq.s32.totalorder %s14, 2
    %p32 = por %p30, %p31
    %p33 = scmp.ne.s32.totalorder %s22, %s23
    %p34 = scmp.eq.s32.totalorder %s14, 0
    %p35 = por %p33, %p34
    %p36 = scmp.ne.s32.totalorder %s22, %s23
    %p37 = scmp.eq.s32.totalorder %s15, 2
    %p38 = por %p36, %p37
    %p40 = scmp.ne.s32.totalorder %s23, %s39
    %p41 = scmp.eq.s32.totalorder %s15, 0
    %p42 = por %p40, %p41
    %s44 = sadd.s32 %s43, 1
    %p47 = scmp.eq.s32.totalorder %s9, 2
    %p48 = scmp.ne.s32.totalorder %s43, %s45
    %p49 = scmp.eq.s32.totalorder %s9, 0
    %p50 = por %p48, %p49
    %p51 = scmp.ne.s32.totalorder %s43, %s45
    %p52 = scmp.eq.s32.totalorder %s14, 2
    %p53 = por %p51, %p52
    %p54 = scmp.ne.s32.totalorder %s45, %s46
    %p55 = scmp.eq.s32.totalorder %s14, 0
    %p56 = por %p54, %p55
    %p57 = scmp.ne.s32.totalorder %s45, %s46
    %p58 = scmp.eq.s32.totalorder %s15, 2
    %p59 = por %p57, %p58
    %p61 = scmp.ne.s32.totalorder %s46, %s60
    %p62 = scmp.eq.s32.totalorder %s15, 0
    %p63 = por %p61, %p62
    %s65 = sadd.s32 %s64, 1
    %p68 = scmp.eq.s32.totalorder %s9, 2
    %p69 = scmp.ne.s32.totalorder %s64, %s66
    %p70 = scmp.eq.s32.totalorder %s9, 0
    %p71 = por %p69, %p70
    %p72 = scmp.ne.s32.totalorder %s64, %s66
    %p73 = scmp.eq.s32.totalorder %s14, 2
    %p74 = por %p72, %p73
    %p75 = scmp.ne.s32.totalorder %s66, %s67
    %p76 = scmp.eq.s32.totalorder %s14, 0
    %p77 = por %p75, %p76
    %p78 = scmp.ne.s32.totalorder %s66, %s67
    %p79 = scmp.eq.s32.totalorder %s15, 2
    %p80 = por %p78, %p79
    %p82 = scmp.ne.s32.totalorder %s67, %s81
    %p83 = scmp.eq.s32.totalorder %s15, 0
    %p84 = por %p82, %p83
    %s85 = ssub.s32 %s9, %s16
    %p86 = scmp.eq.s32.totalorder %s85, 0
    %s88 = sadd.s32 %s87, 1
    %s89 = scalar_select %p86, %s87, %s88
    %p92 = pneg %p86
    %p93 = scmp.eq.s32.totalorder %s9, 2
    %p94 = por %p92, %p93
    %p95 = scmp.ne.s32.totalorder %s87, %s90
    %p96 = scmp.eq.s32.totalorder %s9, 0
    %p97 = por %p95, %p96
    %p98 = scmp.ne.s32.totalorder %s87, %s90
    %p99 = scmp.eq.s32.totalorder %s14, 2
    %p100 = por %p98, %p99
    %p101 = scmp.ne.s32.totalorder %s90, %s91
    %p102 = scmp.eq.s32.totalorder %s14, 0
    %p103 = por %p101, %p102
    %p104 = scmp.ne.s32.totalorder %s90, %s91
    %p105 = scmp.eq.s32.totalorder %s15, 2
    %p106 = por %p104, %p105
    %p108 = scmp.ne.s32.totalorder %s91, %s107
    %p109 = scmp.eq.s32.totalorder %s15, 0
    %p110 = por %p108, %p109
    %p111 = scmp.le.s32.totalorder 1, %s9
    %p112 = scmp.lt.s32.totalorder %s9, 4
    %p113 = pnand %p111, %p112
    %p114 = pneg %p113
    // Predicated region
    $region9: #{gcn_node_forward.8} parent=5 // pred_check
      _
    $region10: #{gcn_node_forward.8} parent=5 // pred_check_branch
      %116 = sbr.rel (%p113) target = $region12
    $region11: #{gcn_node_forward.8} parent=5 // pred_region
      %s117 = ssub.s32 %s9, 1
      // Predicated region
      $region13: #{gcn_node_forward.8} parent=11 // pred_check
        %p118 = pneg %p56
      $region14: #{gcn_node_forward.8} parent=11 // pred_check_branch
        %120 = sbr.rel (%p118) target = $region16
      $region15: #{gcn_node_forward.8} parent=11 // pred_region
        _
      $region16: #{gcn_node_forward.8} parent=11 // pred_fallthru
        _
      // Predicated region
      $region17: #{gcn_node_forward.8} parent=11 // pred_check
        %p121 = pneg %p77
      $region18: #{gcn_node_forward.8} parent=11 // pred_check_branch
        %123 = sbr.rel (%p121) target = $region20
      $region19: #{gcn_node_forward.8} parent=11 // pred_region
        _
      $region20: #{gcn_node_forward.8} parent=11 // pred_fallthru
        _
    $region12: #{gcn_node_forward.8} parent=5 // pred_fallthru
      _
    %p124 = scmp.lt.s32.totalorder %s9, 3
    // Predicated region
    $region21: #{gcn_node_forward.8} parent=5 // pred_check
      %p125 = pneg %p124
    $region22: #{gcn_node_forward.8} parent=5 // pred_check_branch
      %127 = sbr.rel (%p125) target = $region24
    $region23: #{gcn_node_forward.8} parent=5 // pred_region
      // Predicated region
      $region25: #{gcn_node_forward.8} parent=23 // pred_check
        %p128 = pneg %p29
      $region26: #{gcn_node_forward.8} parent=23 // pred_check_branch
        %130 = sbr.rel (%p128) target = $region28
      $region27: #{gcn_node_forward.8} parent=23 // pred_region
        %s131 = smul.u32 16, %s9
        %p132 = scmp.lt.s32.totalorder %s131, 47
        %s133 = scalar_select %p132, %s131, 47
        %s134 = smul.addr %s133, 3
        %s135 = smul.addr %s134, 4
        %s136 = scalar_lea.vmem %s0, %s135
        %s137 = smul.u32 16, %s9
      $region28: #{gcn_node_forward.8} parent=23 // pred_fallthru
        _
    $region24: #{gcn_node_forward.8} parent=5 // pred_fallthru
      _
    %p138 = scmp.le.s32.totalorder 1, %s9
    %p139 = scmp.lt.s32.totalorder %s9, 4
    %p140 = pnand %p138, %p139
    %p141 = pneg %p140
    // Predicated region
    $region29: #{gcn_node_forward.8} parent=5 // pred_check
      _
    $region30: #{gcn_node_forward.8} parent=5 // pred_check_branch
      %143 = sbr.rel (%p140) target = $region32
    $region31: #{gcn_node_forward.8} parent=5 // pred_region
      %s144 = ssub.s32 %s9, 1
      %s145 = smul.u32 16, %s14
      %p146 = scmp.lt.s32.totalorder %s145, 47
      %s147 = scalar_select %p146, %s145, 47
      %s148 = smul.addr %s147, 3
      %s149 = smul.addr %s148, 4
      %s150 = scalar_lea.vmem %s0, %s149
      %p151 = pneg %p35
      %p152 = pneg %p32
      %p153 = pneg %p56
      %p154 = pneg %p53
      %p155 = pneg %p77
      %p156 = pneg %p74
      %p157 = pneg %p103
      %p158 = pneg %p100
      %s159 = smul.u32 16, %s14
      %p160 = scmp.lt.s32.totalorder %s159, 47
      %s161 = scalar_select %p160, %s159, 47
      %s162 = smul.addr %s161, 4
      %s163 = scalar_lea.vmem %s3, %s162
      %s164 = smul.u32 16, %s14
      %p165 = scmp.lt.s32.totalorder %s164, 47
      %s166 = scalar_select %p165, %s164, 47
      %s167 = smul.addr %s166, 3
      %s168 = smul.addr %s167, 4
      %s169 = scalar_lea.vmem %s0, %s168
      %s170 = smul.u32 16, %s14
      %s171 = smul.u32 16, %s14
      %p172 = scmp.lt.s32.totalorder %s171, 47
      %s173 = scalar_select %p172, %s171, 47
      %s174 = smul.addr %s173, 4
      %s175 = scalar_lea.vmem %s3, %s174
      %s176 = smul.u32 16, %s14
      %v178 = vld [vmem:[%s169] sm:$0xff]
      %v179 = vld [vmem:[%s169 + $0x8] sm:$0xf]
      %v180 = vld [vmem:[%s169 + $0xc] sm:$0xff]
      %v181 = vld [vmem:[%s169 + $0x14] sm:$0xf]
      %v182 = vld [vmem:[%s169 + $0x18] sm:$0xff]
      %v183 = vld [vmem:[%s169 + $0x20] sm:$0xf]
      %v184 = vld [vmem:[%s169 + $0x24] sm:$0xff]
      %v185 = vld [vmem:[%s169 + $0x2c] sm:$0xf]
      %v186 = vld [vmem:[%s169 + $0x30] sm:$0xff]
      %v187 = vld [vmem:[%s169 + $0x38] sm:$0xf]
      %v188 = vld [vmem:[%s169 + $0x3c] sm:$0xff]
      %v189 = vld [vmem:[%s169 + $0x44] sm:$0xf]
      %v190 = vld [vmem:[%s169 + $0x48] sm:$0xff]
      %v191 = vld [vmem:[%s169 + $0x50] sm:$0xf]
      %v192 = vld [vmem:[%s169 + $0x54] sm:$0xff]
      %v193 = vld [vmem:[%s169 + $0x5c] sm:$0xf]
      %v194 = vld [vmem:[%s169 + $0x60] sm:$0xff]
      %v195 = vld [vmem:[%s169 + $0x68] sm:$0xf]
      %v196 = vld [vmem:[%s169 + $0x6c] sm:$0xff]
      %v197 = vld [vmem:[%s169 + $0x74] sm:$0xf]
      %v198 = vld [vmem:[%s169 + $0x78] sm:$0xff]
      %v199 = vld [vmem:[%s169 + $0x80] sm:$0xf]
      %v200 = vld [vmem:[%s169 + $0x84] sm:$0xff]
      %v201 = vld [vmem:[%s169 + $0x8c] sm:$0xf]
      %v202 = vld [vmem:[%s169 + $0x90] sm:$0xff]
      %v203 = vld [vmem:[%s169 + $0x98] sm:$0xf]
      %v204 = vld [vmem:[%s169 + $0x9c] sm:$0xff]
      %v205 = vld [vmem:[%s169 + $0xa4] sm:$0xf]
      %v206 = vld [vmem:[%s169 + $0xa8] sm:$0xff]
      %v207 = vld [vmem:[%s169 + $0xb0] sm:$0xf]
      %v208 = vld [vmem:[%s169 + $0xb4] sm:$0xff]
      %v209 = vld [vmem:[%s169 + $0xbc] sm:$0xf]
      %v210 = vld [vmem:[%s1] sm:$0xf]
      %v211 = vld [vmem:[%s1 + $0x4] sm:$0xf]
      %v212 = vld [vmem:[%s1 + $0x8] sm:$0xf]
      %v213 = vld [vmem:[%s1 + $0xc] sm:$0xf]
      %v214 = vld [vmem:[%s1 + $0x10] sm:$0xf]
      %v215 = vld [vmem:[%s1 + $0x14] sm:$0xf]
      %v216 = vld [vmem:[%s1 + $0x18] sm:$0xf]
      %v217 = vld [vmem:[%s1 + $0x1c] sm:$0xf]
      %v218 = vld [vmem:[%s1 + $0x20] sm:$0xf]
      %v219 = vld [vmem:[%s1 + $0x24] sm:$0xf]
      %v220 = vld [vmem:[%s1 + $0x28] sm:$0xf]
      %v221 = vld [vmem:[%s1 + $0x2c] sm:$0xf]
      %v222 = vld [vmem:[%s1 + $0x30] sm:$0xf]
      %v223 = vld [vmem:[%s1 + $0x34] sm:$0xf]
      %v224 = vld [vmem:[%s1 + $0x38] sm:$0xf]
      %v225 = vld [vmem:[%s1 + $0x3c] sm:$0xf]
      %v226 = vld [vmem:[%s1 + $0x40] sm:$0xf]
      %v227 = vld [vmem:[%s1 + $0x44] sm:$0xf]
      %v228 = vld [vmem:[%s1 + $0x48] sm:$0xf]
      %v229 = vld [vmem:[%s1 + $0x4c] sm:$0xf]
      %v230 = vld [vmem:[%s1 + $0x50] sm:$0xf]
      %v231 = vld [vmem:[%s1 + $0x54] sm:$0xf]
      %v232 = vld [vmem:[%s1 + $0x58] sm:$0xf]
      %v233 = vld [vmem:[%s1 + $0x5c] sm:$0xf]
      %v234 = vld [vmem:[%s1 + $0x60] sm:$0xf]
      %v235 = vld [vmem:[%s1 + $0x64] sm:$0xf]
      %v236 = vld [vmem:[%s1 + $0x68] sm:$0xf]
      %v237 = vld [vmem:[%s1 + $0x6c] sm:$0xf]
      %v238 = vld [vmem:[%s1 + $0x70] sm:$0xf]
      %v239 = vld [vmem:[%s1 + $0x74] sm:$0xf]
      %v240 = vld [vmem:[%s1 + $0x78] sm:$0xf]
      %v241 = vld [vmem:[%s1 + $0x7c] sm:$0xf]
      %v242 = vld [vmem:[%s1 + $0x80] sm:$0xf]
      %v243 = vld [vmem:[%s1 + $0x84] sm:$0xf]
      %v244 = vld [vmem:[%s1 + $0x88] sm:$0xf]
      %v245 = vld [vmem:[%s1 + $0x8c] sm:$0xf]
      %v246 = vld [vmem:[%s1 + $0x90] sm:$0xf]
      %v247 = vld [vmem:[%s1 + $0x94] sm:$0xf]
      %v248 = vld [vmem:[%s1 + $0x98] sm:$0xf]
      %v249 = vld [vmem:[%s1 + $0x9c] sm:$0xf]
      %v250 = vld [vmem:[%s1 + $0xa0] sm:$0xf]
      %v251 = vld [vmem:[%s1 + $0xa4] sm:$0xf]
      %v252 = vld [vmem:[%s1 + $0xa8] sm:$0xf]
      %v253 = vld [vmem:[%s1 + $0xac] sm:$0xf]
      %v254 = vld [vmem:[%s1 + $0xb0] sm:$0xf]
      %v255 = vld [vmem:[%s1 + $0xb4] sm:$0xf]
      %v256 = vld [vmem:[%s1 + $0xb8] sm:$0xf]
      %v257 = vld [vmem:[%s1 + $0xbc] sm:$0xf]
      %v258 = vld [vmem:[%s2] sm:$0x1]
      %v260 = vlaneseq
      %v261 = vshrl.u32 %v260, 7
      %v262 = vsub.s32 0, %v261
      %v263 = vrot.slane %v258, %v262
      %v297 = vunpack.c.l.b16 %v178
      %v298 = vunpack.c.h.b16 %v178
      %v299 = vunpack.c.l.b16 %v179
      %v300 = vunpack.c.l.b16 %v180
      %v301 = vunpack.c.h.b16 %v180
      %v302 = vunpack.c.l.b16 %v181
      %v303 = vunpack.c.l.b16 %v182
      %v304 = vunpack.c.h.b16 %v182
      %v305 = vunpack.c.l.b16 %v183
      %v306 = vunpack.c.l.b16 %v184
      %v307 = vunpack.c.h.b16 %v184
      %v308 = vunpack.c.l.b16 %v185
      %v309 = vunpack.c.l.b16 %v186
      %v310 = vunpack.c.h.b16 %v186
      %v311 = vunpack.c.l.b16 %v187
      %v312 = vunpack.c.l.b16 %v188
      %v313 = vunpack.c.h.b16 %v188
      %v314 = vunpack.c.l.b16 %v189
      %v315 = vunpack.c.l.b16 %v190
      %v316 = vunpack.c.h.b16 %v190
      %v317 = vunpack.c.l.b16 %v191
      %v318 = vunpack.c.l.b16 %v192
      %v319 = vunpack.c.h.b16 %v192
      %v320 = vunpack.c.l.b16 %v193
      %v321 = vunpack.c.l.b16 %v194
      %v322 = vunpack.c.h.b16 %v194
      %v323 = vunpack.c.l.b16 %v195
      %v324 = vunpack.c.l.b16 %v196
      %v325 = vunpack.c.h.b16 %v196
      %v326 = vunpack.c.l.b16 %v197
      %v327 = vunpack.c.l.b16 %v198
      %v328 = vunpack.c.h.b16 %v198
      %v329 = vunpack.c.l.b16 %v199
      %v330 = vunpack.c.l.b16 %v200
      %v331 = vunpack.c.h.b16 %v200
      %v332 = vunpack.c.l.b16 %v201
      %v333 = vunpack.c.l.b16 %v202
      %v334 = vunpack.c.h.b16 %v202
      %v335 = vunpack.c.l.b16 %v203
      %v336 = vunpack.c.l.b16 %v204
      %v337 = vunpack.c.h.b16 %v204
      %v338 = vunpack.c.l.b16 %v205
      %v339 = vunpack.c.l.b16 %v206
      %v340 = vunpack.c.h.b16 %v206
      %v341 = vunpack.c.l.b16 %v207
      %v342 = vunpack.c.l.b16 %v208
      %v343 = vunpack.c.h.b16 %v208
      %v344 = vunpack.c.l.b16 %v209
      %v345 = vpack.c.b16 %v300, %v297
      %v346 = vpack.c.b16 %v301, %v298
      %v347 = vpack.c.b16 %v302, %v299
      %v348 = vpack.c.b16 %v306, %v303
      %v349 = vpack.c.b16 %v307, %v304
      %v350 = vpack.c.b16 %v308, %v305
      %v351 = vpack.c.b16 %v312, %v309
      %v352 = vpack.c.b16 %v313, %v310
      %v353 = vpack.c.b16 %v314, %v311
      %v354 = vpack.c.b16 %v318, %v315
      %v355 = vpack.c.b16 %v319, %v316
      %v356 = vpack.c.b16 %v320, %v317
      %v357 = vpack.c.b16 %v324, %v321
      %v358 = vpack.c.b16 %v325, %v322
      %v359 = vpack.c.b16 %v326, %v323
      %v360 = vpack.c.b16 %v330, %v327
      %v361 = vpack.c.b16 %v331, %v328
      %v362 = vpack.c.b16 %v332, %v329
      %v363 = vpack.c.b16 %v336, %v333
      %v364 = vpack.c.b16 %v337, %v334
      %v365 = vpack.c.b16 %v338, %v335
      %v366 = vpack.c.b16 %v342, %v339
      %v367 = vpack.c.b16 %v343, %v340
      %v368 = vpack.c.b16 %v344, %v341
      %v441 = vunpack.c.l.b16 %v210
      %v442 = vunpack.c.l.b16 %v211
      %v443 = vunpack.c.l.b16 %v212
      %v444 = vunpack.c.l.b16 %v213
      %v445 = vunpack.c.l.b16 %v214
      %v446 = vunpack.c.l.b16 %v215
      %v447 = vunpack.c.l.b16 %v216
      %v448 = vunpack.c.l.b16 %v217
      %v449 = vunpack.c.l.b16 %v218
      %v450 = vunpack.c.l.b16 %v219
      %v451 = vunpack.c.l.b16 %v220
      %v452 = vunpack.c.l.b16 %v221
      %v453 = vunpack.c.l.b16 %v222
      %v454 = vunpack.c.l.b16 %v223
      %v455 = vunpack.c.l.b16 %v224
      %v456 = vunpack.c.l.b16 %v225
      %v457 = vunpack.c.l.b16 %v226
      %v458 = vunpack.c.l.b16 %v227
      %v459 = vunpack.c.l.b16 %v228
      %v460 = vunpack.c.l.b16 %v229
      %v461 = vunpack.c.l.b16 %v230
      %v462 = vunpack.c.l.b16 %v231
      %v463 = vunpack.c.l.b16 %v232
      %v464 = vunpack.c.l.b16 %v233
      %v465 = vunpack.c.l.b16 %v234
      %v466 = vunpack.c.l.b16 %v235
      %v467 = vunpack.c.l.b16 %v236
      %v468 = vunpack.c.l.b16 %v237
      %v469 = vunpack.c.l.b16 %v238
      %v470 = vunpack.c.l.b16 %v239
      %v471 = vunpack.c.l.b16 %v240
      %v472 = vunpack.c.l.b16 %v241
      %v473 = vunpack.c.l.b16 %v242
      %v474 = vunpack.c.l.b16 %v243
      %v475 = vunpack.c.l.b16 %v244
      %v476 = vunpack.c.l.b16 %v245
      %v477 = vunpack.c.l.b16 %v246
      %v478 = vunpack.c.l.b16 %v247
      %v479 = vunpack.c.l.b16 %v248
      %v480 = vunpack.c.l.b16 %v249
      %v481 = vunpack.c.l.b16 %v250
      %v482 = vunpack.c.l.b16 %v251
      %v483 = vunpack.c.l.b16 %v252
      %v484 = vunpack.c.l.b16 %v253
      %v485 = vunpack.c.l.b16 %v254
      %v486 = vunpack.c.l.b16 %v255
      %v487 = vunpack.c.l.b16 %v256
      %v488 = vunpack.c.l.b16 %v257
      %v489 = vpack.c.b16 %v442, %v441
      %v490 = vpack.c.b16 %v444, %v443
      %v491 = vpack.c.b16 %v446, %v445
      %v492 = vpack.c.b16 %v448, %v447
      %v493 = vpack.c.b16 %v450, %v449
      %v494 = vpack.c.b16 %v452, %v451
      %v495 = vpack.c.b16 %v454, %v453
      %v496 = vpack.c.b16 %v456, %v455
      %v497 = vpack.c.b16 %v458, %v457
      %v498 = vpack.c.b16 %v460, %v459
      %v499 = vpack.c.b16 %v462, %v461
      %v500 = vpack.c.b16 %v464, %v463
      %v501 = vpack.c.b16 %v466, %v465
      %v502 = vpack.c.b16 %v468, %v467
      %v503 = vpack.c.b16 %v470, %v469
      %v504 = vpack.c.b16 %v472, %v471
      %v505 = vpack.c.b16 %v474, %v473
      %v506 = vpack.c.b16 %v476, %v475
      %v507 = vpack.c.b16 %v478, %v477
      %v508 = vpack.c.b16 %v480, %v479
      %v509 = vpack.c.b16 %v482, %v481
      %v510 = vpack.c.b16 %v484, %v483
      %v511 = vpack.c.b16 %v486, %v485
      %v512 = vpack.c.b16 %v488, %v487
      %537 = vmatprep.subr.bf16.mxu0 0
      %538 = vmatpush1.bf16.msra.mxu0 %v489
      %539 = vmatprep.subr.bf16.mxu0 0
      %540 = vmatpush1.bf16.msra.mxu0 %v490
      %541 = vmatprep.subr.bf16.mxu0 0
      %542 = vmatpush1.bf16.msra.mxu0 %v491
      %543 = vmatprep.subr.bf16.mxu0 0
      %544 = vmatpush1.bf16.msra.mxu0 %v492
      %545 = vmatprep.subr.bf16.mxu0 0
      %546 = vmatpush1.bf16.msra.mxu0 %v493
      %547 = vmatprep.subr.bf16.mxu0 0
      %548 = vmatpush1.bf16.msra.mxu0 %v494
      %549 = vmatprep.subr.bf16.mxu0 0
      %550 = vmatpush1.bf16.msra.mxu0 %v495
      %551 = vmatprep.subr.bf16.mxu0 0
      %552 = vmatpush1.bf16.msra.mxu0 %v496
      %553 = vmatprep.subr.bf16.mxu0 0
      %554 = vmatpush1.bf16.msra.mxu0 %v497
      %555 = vmatprep.subr.bf16.mxu0 0
      %556 = vmatpush1.bf16.msra.mxu0 %v498
      %557 = vmatprep.subr.bf16.mxu0 0
      %558 = vmatpush1.bf16.msra.mxu0 %v499
      %559 = vmatprep.subr.bf16.mxu0 0
      %560 = vmatpush1.bf16.msra.mxu0 %v500
      %561 = vmatprep.subr.bf16.mxu0 0
      %562 = vmatpush1.bf16.msra.mxu0 %v501
      %563 = vmatprep.subr.bf16.mxu0 0
      %564 = vmatpush1.bf16.msra.mxu0 %v502
      %565 = vmatprep.subr.bf16.mxu0 0
      %566 = vmatpush1.bf16.msra.mxu0 %v503
      %567 = vmatprep.subr.bf16.mxu0 0
      %568 = vmatpush1.bf16.msra.mxu0 %v504
      %569 = vmatprep.mubr.bf16.mxu0 %v346
      %570 = vmatmul.mubr.bf16.gmra.mrb[0].mxu0 %v345
      %v571 = vpop.f32.mrb[0].mxu0
      %v572 = vadd.f32 %v263, %v571
      %v573 = vpop.f32.mrb[0].mxu0
      %v574 = vpop.f32.mrb[0].mxu0
      %v575 = vadd.f32 %v263, %v574
      %v576 = vpop.f32.mrb[0].mxu0
      %577 = vmatprep.mubr.bf16.mxu0 %v349
      %578 = vmatmul.mubr.bf16.gmra.mrb[0].mxu0 %v348
      %v579 = vpop.f32.mrb[0].mxu0
      %v580 = vadd.f32 %v263, %v579
      %v581 = vpop.f32.mrb[0].mxu0
      %v582 = vpop.f32.mrb[0].mxu0
      %v583 = vadd.f32 %v263, %v582
      %v584 = vpop.f32.mrb[0].mxu0
      %585 = vmatprep.mubr.bf16.mxu0 %v352
      %586 = vmatmul.mubr.bf16.gmra.mrb[0].mxu0 %v351
      %v587 = vpop.f32.mrb[0].mxu0
      %v588 = vadd.f32 %v263, %v587
      %v589 = vpop.f32.mrb[0].mxu0
      %v590 = vpop.f32.mrb[0].mxu0
      %v591 = vadd.f32 %v263, %v590
      %v592 = vpop.f32.mrb[0].mxu0
      %593 = vmatprep.mubr.bf16.mxu0 %v355
      %594 = vmatmul.mubr.bf16.gmra.mrb[0].mxu0 %v354
      %v595 = vpop.f32.mrb[0].mxu0
      %v596 = vadd.f32 %v263, %v595
      %v597 = vpop.f32.mrb[0].mxu0
      %v598 = vpop.f32.mrb[0].mxu0
      %v599 = vadd.f32 %v263, %v598
      %v600 = vpop.f32.mrb[0].mxu0
      %601 = vmatprep.mubr.bf16.mxu0 %v358
      %602 = vmatmul.mubr.bf16.gmra.mrb[0].mxu0 %v357
      %v603 = vpop.f32.mrb[0].mxu0
      %v604 = vadd.f32 %v263, %v603
      %v605 = vpop.f32.mrb[0].mxu0
      %v606 = vpop.f32.mrb[0].mxu0
      %v607 = vadd.f32 %v263, %v606
      %v608 = vpop.f32.mrb[0].mxu0
      %609 = vmatprep.mubr.bf16.mxu0 %v361
      %610 = vmatmul.mubr.bf16.gmra.mrb[0].mxu0 %v360
      %v611 = vpop.f32.mrb[0].mxu0
      %v612 = vadd.f32 %v263, %v611
      %v613 = vpop.f32.mrb[0].mxu0
      %v614 = vpop.f32.mrb[0].mxu0
      %v615 = vadd.f32 %v263, %v614
      %v616 = vpop.f32.mrb[0].mxu0
      %617 = vmatprep.mubr.bf16.mxu0 %v364
      %618 = vmatmul.mubr.bf16.gmra.mrb[0].mxu0 %v363
      %v619 = vpop.f32.mrb[0].mxu0
      %v620 = vadd.f32 %v263, %v619
      %v621 = vpop.f32.mrb[0].mxu0
      %v622 = vpop.f32.mrb[0].mxu0
      %v623 = vadd.f32 %v263, %v622
      %v624 = vpop.f32.mrb[0].mxu0
      %625 = vmatprep.mubr.bf16.mxu0 %v367
      %626 = vmatmul.mubr.bf16.gmra.mrb[0].mxu0 %v366
      %v627 = vpop.f32.mrb[0].mxu0
      %v628 = vadd.f32 %v263, %v627
      %v629 = vpop.f32.mrb[0].mxu0
      %v630 = vpop.f32.mrb[0].mxu0
      %v631 = vadd.f32 %v263, %v630
      %v632 = vpop.f32.mrb[0].mxu0
      %633 = vdwg.mxu0
      %634 = vmatprep.subr.bf16.mxu0 0
      %635 = vmatpush1.bf16.msra.mxu0 %v505
      %636 = vmatprep.subr.bf16.mxu0 0
      %637 = vmatpush1.bf16.msra.mxu0 %v506
      %638 = vmatprep.subr.bf16.mxu0 0
      %639 = vmatpush1.bf16.msra.mxu0 %v507
      %640 = vmatprep.subr.bf16.mxu0 0
      %641 = vmatpush1.bf16.msra.mxu0 %v508
      %642 = vmatprep.subr.bf16.mxu0 0
      %643 = vmatpush1.bf16.msra.mxu0 %v509
      %644 = vmatprep.subr.bf16.mxu0 0
      %645 = vmatpush1.bf16.msra.mxu0 %v510
      %646 = vmatprep.subr.bf16.mxu0 0
      %647 = vmatpush1.bf16.msra.mxu0 %v511
      %648 = vmatprep.subr.bf16.mxu0 0
      %649 = vmatpush1.bf16.msra.mxu0 %v512
      %650 = vmatprep.subr.bf16.mxu0 0
      %651 = vmatpush1.bf16.msra.mxu0 0
      %652 = vmatprep.subr.bf16.mxu0 0
      %653 = vmatpush1.bf16.msra.mxu0 0
      %654 = vmatprep.subr.bf16.mxu0 0
      %655 = vmatpush1.bf16.msra.mxu0 0
      %656 = vmatprep.subr.bf16.mxu0 0
      %657 = vmatpush1.bf16.msra.mxu0 0
      %658 = vmatprep.subr.bf16.mxu0 0
      %659 = vmatpush1.bf16.msra.mxu0 0
      %660 = vmatprep.subr.bf16.mxu0 0
      %661 = vmatpush1.bf16.msra.mxu0 0
      %662 = vmatprep.subr.bf16.mxu0 0
      %663 = vmatpush1.bf16.msra.mxu0 0
      %664 = vmatprep.subr.bf16.mxu0 0
      %665 = vmatpush1.bf16.msra.mxu0 0
      %666 = vmatprep.mubr.bf16.mxu0 0
      %667 = vmatmul.mubr.bf16.gmra.mrb[0].mxu0 %v347
      %v668 = vpop.f32.mrb[0].mxu0
      %v669 = vadd.f32 %v572, %v668
      %v670 = vpop.f32.mrb[0].mxu0
      %v671 = vpop.f32.mrb[0].mxu0
      %v672 = vadd.f32 %v575, %v671
      %v673 = vpop.f32.mrb[0].mxu0
      %674 = vmatprep.mubr.bf16.mxu0 0
      %675 = vmatmul.mubr.bf16.gmra.mrb[0].mxu0 %v350
      %v676 = vpop.f32.mrb[0].mxu0
      %v677 = vadd.f32 %v580, %v676
      %v678 = vpop.f32.mrb[0].mxu0
      %v679 = vpop.f32.mrb[0].mxu0
      %v680 = vadd.f32 %v583, %v679
      %v681 = vpop.f32.mrb[0].mxu0
      %682 = vmatprep.mubr.bf16.mxu0 0
      %683 = vmatmul.mubr.bf16.gmra.mrb[0].mxu0 %v353
      %v684 = vpop.f32.mrb[0].mxu0
      %v685 = vadd.f32 %v588, %v684
      %v686 = vpop.f32.mrb[0].mxu0
      %v687 = vpop.f32.mrb[0].mxu0
      %v688 = vadd.f32 %v591, %v687
      %v689 = vpop.f32.mrb[0].mxu0
      %690 = vmatprep.mubr.bf16.mxu0 0
      %691 = vmatmul.mubr.bf16.gmra.mrb[0].mxu0 %v356
      %v692 = vpop.f32.mrb[0].mxu0
      %v693 = vadd.f32 %v596, %v692
      %v694 = vpop.f32.mrb[0].mxu0
      %v695 = vpop.f32.mrb[0].mxu0
      %v696 = vadd.f32 %v599, %v695
      %v697 = vpop.f32.mrb[0].mxu0
      %698 = vmatprep.mubr.bf16.mxu0 0
      %699 = vmatmul.mubr.bf16.gmra.mrb[0].mxu0 %v359
      %v700 = vpop.f32.mrb[0].mxu0
      %v701 = vadd.f32 %v604, %v700
      %v702 = vpop.f32.mrb[0].mxu0
      %v703 = vpop.f32.mrb[0].mxu0
      %v704 = vadd.f32 %v607, %v703
      %v705 = vpop.f32.mrb[0].mxu0
      %706 = vmatprep.mubr.bf16.mxu0 0
      %707 = vmatmul.mubr.bf16.gmra.mrb[0].mxu0 %v362
      %v708 = vpop.f32.mrb[0].mxu0
      %v709 = vadd.f32 %v612, %v708
      %v710 = vpop.f32.mrb[0].mxu0
      %v711 = vpop.f32.mrb[0].mxu0
      %v712 = vadd.f32 %v615, %v711
      %v713 = vpop.f32.mrb[0].mxu0
      %714 = vmatprep.mubr.bf16.mxu0 0
      %715 = vmatmul.mubr.bf16.gmra.mrb[0].mxu0 %v365
      %v716 = vpop.f32.mrb[0].mxu0
      %v717 = vadd.f32 %v620, %v716
      %v718 = vpop.f32.mrb[0].mxu0
      %v719 = vpop.f32.mrb[0].mxu0
      %v720 = vadd.f32 %v623, %v719
      %v721 = vpop.f32.mrb[0].mxu0
      %722 = vmatprep.mubr.bf16.mxu0 0
      %723 = vmatmul.mubr.bf16.gmra.mrb[0].mxu0 %v368
      %v724 = vpop.f32.mrb[0].mxu0
      %v725 = vadd.f32 %v628, %v724
      %v726 = vpop.f32.mrb[0].mxu0
      %v727 = vpop.f32.mrb[0].mxu0
      %v728 = vadd.f32 %v631, %v727
      %v729 = vpop.f32.mrb[0].mxu0
      %730 = vdwg.mxu0
      %v731 = vmax.f32 %v669, 0.0
      %v732 = vmax.f32 %v672, 0.0
      %v733 = vmax.f32 %v677, 0.0
      %v734 = vmax.f32 %v680, 0.0
      %v735 = vmax.f32 %v685, 0.0
      %v736 = vmax.f32 %v688, 0.0
      %v737 = vmax.f32 %v693, 0.0
      %v738 = vmax.f32 %v696, 0.0
      %v739 = vmax.f32 %v701, 0.0
      %v740 = vmax.f32 %v704, 0.0
      %v741 = vmax.f32 %v709, 0.0
      %v742 = vmax.f32 %v712, 0.0
      %v743 = vmax.f32 %v717, 0.0
      %v744 = vmax.f32 %v720, 0.0
      %v745 = vmax.f32 %v725, 0.0
      %v746 = vmax.f32 %v728, 0.0
      %v747 = vpack.c.bf16 %v732, %v731
      %v748 = vpack.c.bf16 %v734, %v733
      %v749 = vpack.c.bf16 %v736, %v735
      %v750 = vpack.c.bf16 %v738, %v737
      %v751 = vpack.c.bf16 %v740, %v739
      %v752 = vpack.c.bf16 %v742, %v741
      %v753 = vpack.c.bf16 %v744, %v743
      %v754 = vpack.c.bf16 %v746, %v745
      %v763 = vunpack.c.l.b16 %v747
      %v764 = vunpack.c.h.b16 %v747
      %v765 = vunpack.c.l.b16 %v748
      %v766 = vunpack.c.h.b16 %v748
      %v767 = vunpack.c.l.b16 %v749
      %v768 = vunpack.c.h.b16 %v749
      %v769 = vunpack.c.l.b16 %v750
      %v770 = vunpack.c.h.b16 %v750
      %v771 = vunpack.c.l.b16 %v751
      %v772 = vunpack.c.h.b16 %v751
      %v773 = vunpack.c.l.b16 %v752
      %v774 = vunpack.c.h.b16 %v752
      %v775 = vunpack.c.l.b16 %v753
      %v776 = vunpack.c.h.b16 %v753
      %v777 = vunpack.c.l.b16 %v754
      %v778 = vunpack.c.h.b16 %v754
      %v779 = vpack.c.b16 %v763, %v763
      %v780 = vpack.c.b16 %v764, %v764
      %v781 = vpack.c.b16 %v765, %v765
      %v782 = vpack.c.b16 %v766, %v766
      %v783 = vpack.c.b16 %v767, %v767
      %v784 = vpack.c.b16 %v768, %v768
      %v785 = vpack.c.b16 %v769, %v769
      %v786 = vpack.c.b16 %v770, %v770
      %v787 = vpack.c.b16 %v771, %v771
      %v788 = vpack.c.b16 %v772, %v772
      %v789 = vpack.c.b16 %v773, %v773
      %v790 = vpack.c.b16 %v774, %v774
      %v791 = vpack.c.b16 %v775, %v775
      %v792 = vpack.c.b16 %v776, %v776
      %v793 = vpack.c.b16 %v777, %v777
      %v794 = vpack.c.b16 %v778, %v778
      %811 = vst [vmem:[%s175] sm:$0xf] %v779
      %812 = vst [vmem:[%s175 + $0x4] sm:$0xf] %v780
      %813 = vst [vmem:[%s175 + $0x8] sm:$0xf] %v781
      %814 = vst [vmem:[%s175 + $0xc] sm:$0xf] %v782
      %815 = vst [vmem:[%s175 + $0x10] sm:$0xf] %v783
      %816 = vst [vmem:[%s175 + $0x14] sm:$0xf] %v784
      %817 = vst [vmem:[%s175 + $0x18] sm:$0xf] %v785
      %818 = vst [vmem:[%s175 + $0x1c] sm:$0xf] %v786
      %819 = vst [vmem:[%s175 + $0x20] sm:$0xf] %v787
      %820 = vst [vmem:[%s175 + $0x24] sm:$0xf] %v788
      %821 = vst [vmem:[%s175 + $0x28] sm:$0xf] %v789
      %822 = vst [vmem:[%s175 + $0x2c] sm:$0xf] %v790
      %823 = vst [vmem:[%s175 + $0x30] sm:$0xf] %v791
      %824 = vst [vmem:[%s175 + $0x34] sm:$0xf] %v792
      %825 = vst [vmem:[%s175 + $0x38] sm:$0xf] %v793
      %826 = vst [vmem:[%s175 + $0x3c] sm:$0xf] %v794
      %s827 = smul.u32 16, %s14
      %p828 = scmp.lt.s32.totalorder %s827, 47
      %s829 = scalar_select %p828, %s827, 47
      %s830 = smul.addr %s829, 4
      %s831 = scalar_lea.vmem %s3, %s830
      // Predicated region
      $region33: #{gcn_node_forward.8} parent=31 // pred_check
        %p832 = pneg %p100
      $region34: #{gcn_node_forward.8} parent=31 // pred_check_branch
        %834 = sbr.rel (%p832) target = $region36
      $region35: #{gcn_node_forward.8} parent=31 // pred_region
        %s835 = smul.u32 16, %s14
      $region36: #{gcn_node_forward.8} parent=31 // pred_fallthru
        _
    $region32: #{gcn_node_forward.8} parent=5 // pred_fallthru
      _
    %p836 = scmp.le.s32.totalorder 2, %s9
    // Predicated region
    $region37: #{gcn_node_forward.8} parent=5 // pred_check
      %p837 = pneg %p836
    $region38: #{gcn_node_forward.8} parent=5 // pred_check_branch
      %839 = sbr.rel (%p837) target = $region40
    $region39: #{gcn_node_forward.8} parent=5 // pred_region
      %s840 = ssub.s32 %s9, 2
      // Predicated region
      $region41: #{gcn_node_forward.8} parent=39 // pred_check
        %p841 = pneg %p106
      $region42: #{gcn_node_forward.8} parent=39 // pred_check_branch
        %843 = sbr.rel (%p841) target = $region44
      $region43: #{gcn_node_forward.8} parent=39 // pred_region
        %s844 = smul.u32 16, %s15
        %p845 = scmp.lt.s32.totalorder %s844, 47
        %s846 = scalar_select %p845, %s844, 47
        %s847 = smul.addr %s846, 4
        %s848 = scalar_lea.vmem %s3, %s847
      $region44: #{gcn_node_forward.8} parent=39 // pred_fallthru
        _
    $region40: #{gcn_node_forward.8} parent=5 // pred_fallthru
      _
  $region6: #{gcn_node_forward.8} parent=0 // loop_footer
    %s13 = sadd.s32 1, %s9
  $region7: #{gcn_node_forward.8} parent=0 // loop_footer_branch
    %8 = sbr.rel target = $region3
  $region8: #{gcn_node_forward.8} parent=0 // loop_exit
    _

// kernel: gcn_node_forward.10
$region0: #{gcn_node_forward.10}
  #allocation0 [shape = 'u32[]', space=smem, size = 0x4, offset = 0x4, fixed_abs, tag = 'smem constant byte address 0x4 - core index']
  #allocation1 [shape = 'u32[144,128]{1,0:T(1,128)}', space=vmem, size = 0x12000, scoped, tag = 'internal scratch']
  %s0 = inlined_call_operand.vmem [shape: bf16[384,384], index: 0, kind: input, shape index: {}]
  %s1 = inlined_call_operand.vmem [shape: bf16[384,128], index: 1, kind: input, shape index: {}]
  %s2 = inlined_call_operand.vmem [shape: f32[1,128], index: 2, kind: input, shape index: {}]
  %s3 = inlined_call_operand.vmem [shape: bf16[384,128], index: 3, kind: output, shape index: {}]
  %s4 = sld [smem:[#allocation0]]
  $region45: #{gcn_node_forward.10} parent=0
    _
  %s6 = ssub.s32 1, %s4
  %s7 = scalar_select 0, %s6, %s4
  loop: start=0, step=1, limit=5
  $region2: #{gcn_node_forward.10} parent=0 // loop_pre_header
    _
  $region3: #{gcn_node_forward.10} parent=0 // loop_header
    %s9 = sphi 0, %s13
    %p10 = scmp.ge.s32.totalorder %s9, 5
    %s19 = sphi 0, %s21
    %s22 = sphi 0, %s19
    %s23 = sphi 0, %s22
    %s39 = sphi 0, %s23
    %s43 = sphi 0, %s43
    %s45 = sphi 0, %s43
    %s46 = sphi 0, %s45
    %s60 = sphi 0, %s46
    %s64 = sphi 0, %s64
    %s66 = sphi 0, %s64
    %s67 = sphi 0, %s66
    %s81 = sphi 0, %s67
    %s87 = sphi 0, %s89
    %s90 = sphi 0, %s87
    %s91 = sphi 0, %s90
    %s107 = sphi 0, %s91
  $region4: #{gcn_node_forward.10} parent=0 // loop_header_branch
    %12 = sbr.rel (%p10) target = $region8
  $region5: #{gcn_node_forward.10} parent=0 // loop_body
    %s14 = ssub.s32 %s9, 1
    %s15 = ssub.s32 %s9, 2
    %s16 = sadd.s32 %s9, 1
    %s17 = ssub.s32 %s9, %s16
    %p18 = scmp.eq.s32.totalorder %s17, 0
    %s20 = sadd.s32 %s19, 1
    %s21 = scalar_select %p18, %s19, %s20
    %p24 = pneg %p18
    %p25 = scmp.eq.s32.totalorder %s9, 2
    %p26 = por %p24, %p25
    %p27 = scmp.ne.s32.totalorder %s19, %s22
    %p28 = scmp.eq.s32.totalorder %s9, 0
    %p29 = por %p27, %p28
    %p30 = scmp.ne.s32.totalorder %s19, %s22
    %p31 = scmp.eq.s32.totalorder %s14, 2
    %p32 = por %p30, %p31
    %p33 = scmp.ne.s32.totalorder %s22, %s23
    %p34 = scmp.eq.s32.totalorder %s14, 0
    %p35 = por %p33, %p34
    %p36 = scmp.ne.s32.totalorder %s22, %s23
    %p37 = scmp.eq.s32.totalorder %s15, 2
    %p38 = por %p36, %p37
    %p40 = scmp.ne.s32.totalorder %s23, %s39
    %p41 = scmp.eq.s32.totalorder %s15, 0
    %p42 = por %p40, %p41
    %s44 = sadd.s32 %s43, 1
    %p47 = scmp.eq.s32.totalorder %s9, 2
    %p48 = scmp.ne.s32.totalorder %s43, %s45
    %p49 = scmp.eq.s32.totalorder %s9, 0
    %p50 = por %p48, %p49
    %p51 = scmp.ne.s32.totalorder %s43, %s45
    %p52 = scmp.eq.s32.totalorder %s14, 2
    %p53 = por %p51, %p52
    %p54 = scmp.ne.s32.totalorder %s45, %s46
    %p55 = scmp.eq.s32.totalorder %s14, 0
    %p56 = por %p54, %p55
    %p57 = scmp.ne.s32.totalorder %s45, %s46
    %p58 = scmp.eq.s32.totalorder %s15, 2
    %p59 = por %p57, %p58
    %p61 = scmp.ne.s32.totalorder %s46, %s60
    %p62 = scmp.eq.s32.totalorder %s15, 0
    %p63 = por %p61, %p62
    %s65 = sadd.s32 %s64, 1
    %p68 = scmp.eq.s32.totalorder %s9, 2
    %p69 = scmp.ne.s32.totalorder %s64, %s66
    %p70 = scmp.eq.s32.totalorder %s9, 0
    %p71 = por %p69, %p70
    %p72 = scmp.ne.s32.totalorder %s64, %s66
    %p73 = scmp.eq.s32.totalorder %s14, 2
    %p74 = por %p72, %p73
    %p75 = scmp.ne.s32.totalorder %s66, %s67
    %p76 = scmp.eq.s32.totalorder %s14, 0
    %p77 = por %p75, %p76
    %p78 = scmp.ne.s32.totalorder %s66, %s67
    %p79 = scmp.eq.s32.totalorder %s15, 2
    %p80 = por %p78, %p79
    %p82 = scmp.ne.s32.totalorder %s67, %s81
    %p83 = scmp.eq.s32.totalorder %s15, 0
    %p84 = por %p82, %p83
    %s85 = ssub.s32 %s9, %s16
    %p86 = scmp.eq.s32.totalorder %s85, 0
    %s88 = sadd.s32 %s87, 1
    %s89 = scalar_select %p86, %s87, %s88
    %p92 = pneg %p86
    %p93 = scmp.eq.s32.totalorder %s9, 2
    %p94 = por %p92, %p93
    %p95 = scmp.ne.s32.totalorder %s87, %s90
    %p96 = scmp.eq.s32.totalorder %s9, 0
    %p97 = por %p95, %p96
    %p98 = scmp.ne.s32.totalorder %s87, %s90
    %p99 = scmp.eq.s32.totalorder %s14, 2
    %p100 = por %p98, %p99
    %p101 = scmp.ne.s32.totalorder %s90, %s91
    %p102 = scmp.eq.s32.totalorder %s14, 0
    %p103 = por %p101, %p102
    %p104 = scmp.ne.s32.totalorder %s90, %s91
    %p105 = scmp.eq.s32.totalorder %s15, 2
    %p106 = por %p104, %p105
    %p108 = scmp.ne.s32.totalorder %s91, %s107
    %p109 = scmp.eq.s32.totalorder %s15, 0
    %p110 = por %p108, %p109
    %p111 = scmp.le.s32.totalorder 1, %s9
    %p112 = scmp.lt.s32.totalorder %s9, 4
    %p113 = pnand %p111, %p112
    %p114 = pneg %p113
    // Predicated region
    $region9: #{gcn_node_forward.10} parent=5 // pred_check
      _
    $region10: #{gcn_node_forward.10} parent=5 // pred_check_branch
      %116 = sbr.rel (%p113) target = $region12
    $region11: #{gcn_node_forward.10} parent=5 // pred_region
      %s117 = ssub.s32 %s9, 1
      // Predicated region
      $region13: #{gcn_node_forward.10} parent=11 // pred_check
        %p118 = pneg %p56
      $region14: #{gcn_node_forward.10} parent=11 // pred_check_branch
        %120 = sbr.rel (%p118) target = $region16
      $region15: #{gcn_node_forward.10} parent=11 // pred_region
        _
      $region16: #{gcn_node_forward.10} parent=11 // pred_fallthru
        _
      // Predicated region
      $region17: #{gcn_node_forward.10} parent=11 // pred_check
        %p121 = pneg %p77
      $region18: #{gcn_node_forward.10} parent=11 // pred_check_branch
        %123 = sbr.rel (%p121) target = $region20
      $region19: #{gcn_node_forward.10} parent=11 // pred_region
        _
      $region20: #{gcn_node_forward.10} parent=11 // pred_fallthru
        _
    $region12: #{gcn_node_forward.10} parent=5 // pred_fallthru
      _
    %p124 = scmp.lt.s32.totalorder %s9, 3
    // Predicated region
    $region21: #{gcn_node_forward.10} parent=5 // pred_check
      %p125 = pneg %p124
    $region22: #{gcn_node_forward.10} parent=5 // pred_check_branch
      %127 = sbr.rel (%p125) target = $region24
    $region23: #{gcn_node_forward.10} parent=5 // pred_region
      // Predicated region
      $region25: #{gcn_node_forward.10} parent=23 // pred_check
        %p128 = pneg %p29
      $region26: #{gcn_node_forward.10} parent=23 // pred_check_branch
        %130 = sbr.rel (%p128) target = $region28
      $region27: #{gcn_node_forward.10} parent=23 // pred_region
        %s131 = smul.u32 16, %s9
        %p132 = scmp.lt.s32.totalorder %s131, 47
        %s133 = scalar_select %p132, %s131, 47
        %s134 = smul.addr %s133, 3
        %s135 = smul.addr %s134, 4
        %s136 = scalar_lea.vmem %s0, %s135
        %s137 = smul.u32 16, %s9
      $region28: #{gcn_node_forward.10} parent=23 // pred_fallthru
        _
    $region24: #{gcn_node_forward.10} parent=5 // pred_fallthru
      _
    %p138 = scmp.le.s32.totalorder 1, %s9
    %p139 = scmp.lt.s32.totalorder %s9, 4
    %p140 = pnand %p138, %p139
    %p141 = pneg %p140
    // Predicated region
    $region29: #{gcn_node_forward.10} parent=5 // pred_check
      _
    $region30: #{gcn_node_forward.10} parent=5 // pred_check_branch
      %143 = sbr.rel (%p140) target = $region32
    $region31: #{gcn_node_forward.10} parent=5 // pred_region
      %s144 = ssub.s32 %s9, 1
      %s145 = smul.u32 16, %s14
      %p146 = scmp.lt.s32.totalorder %s145, 47
      %s147 = scalar_select %p146, %s145, 47
      %s148 = smul.addr %s147, 3
      %s149 = smul.addr %s148, 4
      %s150 = scalar_lea.vmem %s0, %s149
      %p151 = pneg %p35
      %p152 = pneg %p32
      %p153 = pneg %p56
      %p154 = pneg %p53
      %p155 = pneg %p77
      %p156 = pneg %p74
      %p157 = pneg %p103
      %p158 = pneg %p100
      %s159 = smul.u32 16, %s14
      %p160 = scmp.lt.s32.totalorder %s159, 47
      %s161 = scalar_select %p160, %s159, 47
      %s162 = smul.addr %s161, 4
      %s163 = scalar_lea.vmem %s3, %s162
      %s164 = smul.u32 16, %s14
      %p165 = scmp.lt.s32.totalorder %s164, 47
      %s166 = scalar_select %p165, %s164, 47
      %s167 = smul.addr %s166, 3
      %s168 = smul.addr %s167, 4
      %s169 = scalar_lea.vmem %s0, %s168
      %s170 = smul.u32 16, %s14
      %s171 = smul.u32 16, %s14
      %p172 = scmp.lt.s32.totalorder %s171, 47
      %s173 = scalar_select %p172, %s171, 47
      %s174 = smul.addr %s173, 4
      %s175 = scalar_lea.vmem %s3, %s174
      %s176 = smul.u32 16, %s14
      %v178 = vld [vmem:[%s169] sm:$0xff]
      %v179 = vld [vmem:[%s169 + $0x8] sm:$0xf]
      %v180 = vld [vmem:[%s169 + $0xc] sm:$0xff]
      %v181 = vld [vmem:[%s169 + $0x14] sm:$0xf]
      %v182 = vld [vmem:[%s169 + $0x18] sm:$0xff]
      %v183 = vld [vmem:[%s169 + $0x20] sm:$0xf]
      %v184 = vld [vmem:[%s169 + $0x24] sm:$0xff]
      %v185 = vld [vmem:[%s169 + $0x2c] sm:$0xf]
      %v186 = vld [vmem:[%s169 + $0x30] sm:$0xff]
      %v187 = vld [vmem:[%s169 + $0x38] sm:$0xf]
      %v188 = vld [vmem:[%s169 + $0x3c] sm:$0xff]
      %v189 = vld [vmem:[%s169 + $0x44] sm:$0xf]
      %v190 = vld [vmem:[%s169 + $0x48] sm:$0xff]
      %v191 = vld [vmem:[%s169 + $0x50] sm:$0xf]
      %v192 = vld [vmem:[%s169 + $0x54] sm:$0xff]
      %v193 = vld [vmem:[%s169 + $0x5c] sm:$0xf]
      %v194 = vld [vmem:[%s169 + $0x60] sm:$0xff]
      %v195 = vld [vmem:[%s169 + $0x68] sm:$0xf]
      %v196 = vld [vmem:[%s169 + $0x6c] sm:$0xff]
      %v197 = vld [vmem:[%s169 + $0x74] sm:$0xf]
      %v198 = vld [vmem:[%s169 + $0x78] sm:$0xff]
      %v199 = vld [vmem:[%s169 + $0x80] sm:$0xf]
      %v200 = vld [vmem:[%s169 + $0x84] sm:$0xff]
      %v201 = vld [vmem:[%s169 + $0x8c] sm:$0xf]
      %v202 = vld [vmem:[%s169 + $0x90] sm:$0xff]
      %v203 = vld [vmem:[%s169 + $0x98] sm:$0xf]
      %v204 = vld [vmem:[%s169 + $0x9c] sm:$0xff]
      %v205 = vld [vmem:[%s169 + $0xa4] sm:$0xf]
      %v206 = vld [vmem:[%s169 + $0xa8] sm:$0xff]
      %v207 = vld [vmem:[%s169 + $0xb0] sm:$0xf]
      %v208 = vld [vmem:[%s169 + $0xb4] sm:$0xff]
      %v209 = vld [vmem:[%s169 + $0xbc] sm:$0xf]
      %v210 = vld [vmem:[%s1] sm:$0xf]
      %v211 = vld [vmem:[%s1 + $0x4] sm:$0xf]
      %v212 = vld [vmem:[%s1 + $0x8] sm:$0xf]
      %v213 = vld [vmem:[%s1 + $0xc] sm:$0xf]
      %v214 = vld [vmem:[%s1 + $0x10] sm:$0xf]
      %v215 = vld [vmem:[%s1 + $0x14] sm:$0xf]
      %v216 = vld [vmem:[%s1 + $0x18] sm:$0xf]
      %v217 = vld [vmem:[%s1 + $0x1c] sm:$0xf]
      %v218 = vld [vmem:[%s1 + $0x20] sm:$0xf]
      %v219 = vld [vmem:[%s1 + $0x24] sm:$0xf]
      %v220 = vld [vmem:[%s1 + $0x28] sm:$0xf]
      %v221 = vld [vmem:[%s1 + $0x2c] sm:$0xf]
      %v222 = vld [vmem:[%s1 + $0x30] sm:$0xf]
      %v223 = vld [vmem:[%s1 + $0x34] sm:$0xf]
      %v224 = vld [vmem:[%s1 + $0x38] sm:$0xf]
      %v225 = vld [vmem:[%s1 + $0x3c] sm:$0xf]
      %v226 = vld [vmem:[%s1 + $0x40] sm:$0xf]
      %v227 = vld [vmem:[%s1 + $0x44] sm:$0xf]
      %v228 = vld [vmem:[%s1 + $0x48] sm:$0xf]
      %v229 = vld [vmem:[%s1 + $0x4c] sm:$0xf]
      %v230 = vld [vmem:[%s1 + $0x50] sm:$0xf]
      %v231 = vld [vmem:[%s1 + $0x54] sm:$0xf]
      %v232 = vld [vmem:[%s1 + $0x58] sm:$0xf]
      %v233 = vld [vmem:[%s1 + $0x5c] sm:$0xf]
      %v234 = vld [vmem:[%s1 + $0x60] sm:$0xf]
      %v235 = vld [vmem:[%s1 + $0x64] sm:$0xf]
      %v236 = vld [vmem:[%s1 + $0x68] sm:$0xf]
      %v237 = vld [vmem:[%s1 + $0x6c] sm:$0xf]
      %v238 = vld [vmem:[%s1 + $0x70] sm:$0xf]
      %v239 = vld [vmem:[%s1 + $0x74] sm:$0xf]
      %v240 = vld [vmem:[%s1 + $0x78] sm:$0xf]
      %v241 = vld [vmem:[%s1 + $0x7c] sm:$0xf]
      %v242 = vld [vmem:[%s1 + $0x80] sm:$0xf]
      %v243 = vld [vmem:[%s1 + $0x84] sm:$0xf]
      %v244 = vld [vmem:[%s1 + $0x88] sm:$0xf]
      %v245 = vld [vmem:[%s1 + $0x8c] sm:$0xf]
      %v246 = vld [vmem:[%s1 + $0x90] sm:$0xf]
      %v247 = vld [vmem:[%s1 + $0x94] sm:$0xf]
      %v248 = vld [vmem:[%s1 + $0x98] sm:$0xf]
      %v249 = vld [vmem:[%s1 + $0x9c] sm:$0xf]
      %v250 = vld [vmem:[%s1 + $0xa0] sm:$0xf]
      %v251 = vld [vmem:[%s1 + $0xa4] sm:$0xf]
      %v252 = vld [vmem:[%s1 + $0xa8] sm:$0xf]
      %v253 = vld [vmem:[%s1 + $0xac] sm:$0xf]
      %v254 = vld [vmem:[%s1 + $0xb0] sm:$0xf]
      %v255 = vld [vmem:[%s1 + $0xb4] sm:$0xf]
      %v256 = vld [vmem:[%s1 + $0xb8] sm:$0xf]
      %v257 = vld [vmem:[%s1 + $0xbc] sm:$0xf]
      %v258 = vld [vmem:[%s2] sm:$0x1]
      %v260 = vlaneseq
      %v261 = vshrl.u32 %v260, 7
      %v262 = vsub.s32 0, %v261
      %v263 = vrot.slane %v258, %v262
      %v297 = vunpack.c.l.b16 %v178
      %v298 = vunpack.c.h.b16 %v178
      %v299 = vunpack.c.l.b16 %v179
      %v300 = vunpack.c.l.b16 %v180
      %v301 = vunpack.c.h.b16 %v180
      %v302 = vunpack.c.l.b16 %v181
      %v303 = vunpack.c.l.b16 %v182
      %v304 = vunpack.c.h.b16 %v182
      %v305 = vunpack.c.l.b16 %v183
      %v306 = vunpack.c.l.b16 %v184
      %v307 = vunpack.c.h.b16 %v184
      %v308 = vunpack.c.l.b16 %v185
      %v309 = vunpack.c.l.b16 %v186
      %v310 = vunpack.c.h.b16 %v186
      %v311 = vunpack.c.l.b16 %v187
      %v312 = vunpack.c.l.b16 %v188
      %v313 = vunpack.c.h.b16 %v188
      %v314 = vunpack.c.l.b16 %v189
      %v315 = vunpack.c.l.b16 %v190
      %v316 = vunpack.c.h.b16 %v190
      %v317 = vunpack.c.l.b16 %v191
      %v318 = vunpack.c.l.b16 %v192
      %v319 = vunpack.c.h.b16 %v192
      %v320 = vunpack.c.l.b16 %v193
      %v321 = vunpack.c.l.b16 %v194
      %v322 = vunpack.c.h.b16 %v194
      %v323 = vunpack.c.l.b16 %v195
      %v324 = vunpack.c.l.b16 %v196
      %v325 = vunpack.c.h.b16 %v196
      %v326 = vunpack.c.l.b16 %v197
      %v327 = vunpack.c.l.b16 %v198
      %v328 = vunpack.c.h.b16 %v198
      %v329 = vunpack.c.l.b16 %v199
      %v330 = vunpack.c.l.b16 %v200
      %v331 = vunpack.c.h.b16 %v200
      %v332 = vunpack.c.l.b16 %v201
      %v333 = vunpack.c.l.b16 %v202
      %v334 = vunpack.c.h.b16 %v202
      %v335 = vunpack.c.l.b16 %v203
      %v336 = vunpack.c.l.b16 %v204
      %v337 = vunpack.c.h.b16 %v204
      %v338 = vunpack.c.l.b16 %v205
      %v339 = vunpack.c.l.b16 %v206
      %v340 = vunpack.c.h.b16 %v206
      %v341 = vunpack.c.l.b16 %v207
      %v342 = vunpack.c.l.b16 %v208
      %v343 = vunpack.c.h.b16 %v208
      %v344 = vunpack.c.l.b16 %v209
      %v345 = vpack.c.b16 %v300, %v297
      %v346 = vpack.c.b16 %v301, %v298
      %v347 = vpack.c.b16 %v302, %v299
      %v348 = vpack.c.b16 %v306, %v303
      %v349 = vpack.c.b16 %v307, %v304
      %v350 = vpack.c.b16 %v308, %v305
      %v351 = vpack.c.b16 %v312, %v309
      %v352 = vpack.c.b16 %v313, %v310
      %v353 = vpack.c.b16 %v314, %v311
      %v354 = vpack.c.b16 %v318, %v315
      %v355 = vpack.c.b16 %v319, %v316
      %v356 = vpack.c.b16 %v320, %v317
      %v357 = vpack.c.b16 %v324, %v321
      %v358 = vpack.c.b16 %v325, %v322
      %v359 = vpack.c.b16 %v326, %v323
      %v360 = vpack.c.b16 %v330, %v327
      %v361 = vpack.c.b16 %v331, %v328
      %v362 = vpack.c.b16 %v332, %v329
      %v363 = vpack.c.b16 %v336, %v333
      %v364 = vpack.c.b16 %v337, %v334
      %v365 = vpack.c.b16 %v338, %v335
      %v366 = vpack.c.b16 %v342, %v339
      %v367 = vpack.c.b16 %v343, %v340
      %v368 = vpack.c.b16 %v344, %v341
      %v441 = vunpack.c.l.b16 %v210
      %v442 = vunpack.c.l.b16 %v211
      %v443 = vunpack.c.l.b16 %v212
      %v444 = vunpack.c.l.b16 %v213
      %v445 = vunpack.c.l.b16 %v214
      %v446 = vunpack.c.l.b16 %v215
      %v447 = vunpack.c.l.b16 %v216
      %v448 = vunpack.c.l.b16 %v217
      %v449 = vunpack.c.l.b16 %v218
      %v450 = vunpack.c.l.b16 %v219
      %v451 = vunpack.c.l.b16 %v220
      %v452 = vunpack.c.l.b16 %v221
      %v453 = vunpack.c.l.b16 %v222
      %v454 = vunpack.c.l.b16 %v223
      %v455 = vunpack.c.l.b16 %v224
      %v456 = vunpack.c.l.b16 %v225
      %v457 = vunpack.c.l.b16 %v226
      %v458 = vunpack.c.l.b16 %v227
      %v459 = vunpack.c.l.b16 %v228
      %v460 = vunpack.c.l.b16 %v229
      %v461 = vunpack.c.l.b16 %v230
      %v462 = vunpack.c.l.b16 %v231
      %v463 = vunpack.c.l.b16 %v232
      %v464 = vunpack.c.l.b16 %v233
      %v465 = vunpack.c.l.b16 %v234
      %v466 = vunpack.c.l.b16 %v235
      %v467 = vunpack.c.l.b16 %v236
      %v468 = vunpack.c.l.b16 %v237
      %v469 = vunpack.c.l.b16 %v238
      %v470 = vunpack.c.l.b16 %v239
      %v471 = vunpack.c.l.b16 %v240
      %v472 = vunpack.c.l.b16 %v241
      %v473 = vunpack.c.l.b16 %v242
      %v474 = vunpack.c.l.b16 %v243
      %v475 = vunpack.c.l.b16 %v244
      %v476 = vunpack.c.l.b16 %v245
      %v477 = vunpack.c.l.b16 %v246
      %v478 = vunpack.c.l.b16 %v247
      %v479 = vunpack.c.l.b16 %v248
      %v480 = vunpack.c.l.b16 %v249
      %v481 = vunpack.c.l.b16 %v250
      %v482 = vunpack.c.l.b16 %v251
      %v483 = vunpack.c.l.b16 %v252
      %v484 = vunpack.c.l.b16 %v253
      %v485 = vunpack.c.l.b16 %v254
      %v486 = vunpack.c.l.b16 %v255
      %v487 = vunpack.c.l.b16 %v256
      %v488 = vunpack.c.l.b16 %v257
      %v489 = vpack.c.b16 %v442, %v441
      %v490 = vpack.c.b16 %v444, %v443
      %v491 = vpack.c.b16 %v446, %v445
      %v492 = vpack.c.b16 %v448, %v447
      %v493 = vpack.c.b16 %v450, %v449
      %v494 = vpack.c.b16 %v452, %v451
      %v495 = vpack.c.b16 %v454, %v453
      %v496 = vpack.c.b16 %v456, %v455
      %v497 = vpack.c.b16 %v458, %v457
      %v498 = vpack.c.b16 %v460, %v459
      %v499 = vpack.c.b16 %v462, %v461
      %v500 = vpack.c.b16 %v464, %v463
      %v501 = vpack.c.b16 %v466, %v465
      %v502 = vpack.c.b16 %v468, %v467
      %v503 = vpack.c.b16 %v470, %v469
      %v504 = vpack.c.b16 %v472, %v471
      %v505 = vpack.c.b16 %v474, %v473
      %v506 = vpack.c.b16 %v476, %v475
      %v507 = vpack.c.b16 %v478, %v477
      %v508 = vpack.c.b16 %v480, %v479
      %v509 = vpack.c.b16 %v482, %v481
      %v510 = vpack.c.b16 %v484, %v483
      %v511 = vpack.c.b16 %v486, %v485
      %v512 = vpack.c.b16 %v488, %v487
      %537 = vmatprep.subr.bf16.mxu0 0
      %538 = vmatpush1.bf16.msra.mxu0 %v489
      %539 = vmatprep.subr.bf16.mxu0 0
      %540 = vmatpush1.bf16.msra.mxu0 %v490
      %541 = vmatprep.subr.bf16.mxu0 0
      %542 = vmatpush1.bf16.msra.mxu0 %v491
      %543 = vmatprep.subr.bf16.mxu0 0
      %544 = vmatpush1.bf16.msra.mxu0 %v492
      %545 = vmatprep.subr.bf16.mxu0 0
      %546 = vmatpush1.bf16.msra.mxu0 %v493
      %547 = vmatprep.subr.bf16.mxu0 0
      %548 = vmatpush1.bf16.msra.mxu0 %v494
      %549 = vmatprep.subr.bf16.mxu0 0
      %550 = vmatpush1.bf16.msra.mxu0 %v495
      %551 = vmatprep.subr.bf16.mxu0 0
      %552 = vmatpush1.bf16.msra.mxu0 %v496
      %553 = vmatprep.subr.bf16.mxu0 0
      %554 = vmatpush1.bf16.msra.mxu0 %v497
      %555 = vmatprep.subr.bf16.mxu0 0
      %556 = vmatpush1.bf16.msra.mxu0 %v498
      %557 = vmatprep.subr.bf16.mxu0 0
      %558 = vmatpush1.bf16.msra.mxu0 %v499
      %559 = vmatprep.subr.bf16.mxu0 0
      %560 = vmatpush1.bf16.msra.mxu0 %v500
      %561 = vmatprep.subr.bf16.mxu0 0
      %562 = vmatpush1.bf16.msra.mxu0 %v501
      %563 = vmatprep.subr.bf16.mxu0 0
      %564 = vmatpush1.bf16.msra.mxu0 %v502
      %565 = vmatprep.subr.bf16.mxu0 0
      %566 = vmatpush1.bf16.msra.mxu0 %v503
      %567 = vmatprep.subr.bf16.mxu0 0
      %568 = vmatpush1.bf16.msra.mxu0 %v504
      %569 = vmatprep.mubr.bf16.mxu0 %v346
      %570 = vmatmul.mubr.bf16.gmra.mrb[0].mxu0 %v345
      %v571 = vpop.f32.mrb[0].mxu0
      %v572 = vadd.f32 %v263, %v571
      %v573 = vpop.f32.mrb[0].mxu0
      %v574 = vpop.f32.mrb[0].mxu0
      %v575 = vadd.f32 %v263, %v574
      %v576 = vpop.f32.mrb[0].mxu0
      %577 = vmatprep.mubr.bf16.mxu0 %v349
      %578 = vmatmul.mubr.bf16.gmra.mrb[0].mxu0 %v348
      %v579 = vpop.f32.mrb[0].mxu0
      %v580 = vadd.f32 %v263, %v579
      %v581 = vpop.f32.mrb[0].mxu0
      %v582 = vpop.f32.mrb[0].mxu0
      %v583 = vadd.f32 %v263, %v582
      %v584 = vpop.f32.mrb[0].mxu0
      %585 = vmatprep.mubr.bf16.mxu0 %v352
      %586 = vmatmul.mubr.bf16.gmra.mrb[0].mxu0 %v351
      %v587 = vpop.f32.mrb[0].mxu0
      %v588 = vadd.f32 %v263, %v587
      %v589 = vpop.f32.mrb[0].mxu0
      %v590 = vpop.f32.mrb[0].mxu0
      %v591 = vadd.f32 %v263, %v590
      %v592 = vpop.f32.mrb[0].mxu0
      %593 = vmatprep.mubr.bf16.mxu0 %v355
      %594 = vmatmul.mubr.bf16.gmra.mrb[0].mxu0 %v354
      %v595 = vpop.f32.mrb[0].mxu0
      %v596 = vadd.f32 %v263, %v595
      %v597 = vpop.f32.mrb[0].mxu0
      %v598 = vpop.f32.mrb[0].mxu0
      %v599 = vadd.f32 %v263, %v598
      %v600 = vpop.f32.mrb[0].mxu0
      %601 = vmatprep.mubr.bf16.mxu0 %v358
      %602 = vmatmul.mubr.bf16.gmra.mrb[0].mxu0 %v357
      %v603 = vpop.f32.mrb[0].mxu0
      %v604 = vadd.f32 %v263, %v603
      %v605 = vpop.f32.mrb[0].mxu0
      %v606 = vpop.f32.mrb[0].mxu0
      %v607 = vadd.f32 %v263, %v606
      %v608 = vpop.f32.mrb[0].mxu0
      %609 = vmatprep.mubr.bf16.mxu0 %v361
      %610 = vmatmul.mubr.bf16.gmra.mrb[0].mxu0 %v360
      %v611 = vpop.f32.mrb[0].mxu0
      %v612 = vadd.f32 %v263, %v611
      %v613 = vpop.f32.mrb[0].mxu0
      %v614 = vpop.f32.mrb[0].mxu0
      %v615 = vadd.f32 %v263, %v614
      %v616 = vpop.f32.mrb[0].mxu0
      %617 = vmatprep.mubr.bf16.mxu0 %v364
      %618 = vmatmul.mubr.bf16.gmra.mrb[0].mxu0 %v363
      %v619 = vpop.f32.mrb[0].mxu0
      %v620 = vadd.f32 %v263, %v619
      %v621 = vpop.f32.mrb[0].mxu0
      %v622 = vpop.f32.mrb[0].mxu0
      %v623 = vadd.f32 %v263, %v622
      %v624 = vpop.f32.mrb[0].mxu0
      %625 = vmatprep.mubr.bf16.mxu0 %v367
      %626 = vmatmul.mubr.bf16.gmra.mrb[0].mxu0 %v366
      %v627 = vpop.f32.mrb[0].mxu0
      %v628 = vadd.f32 %v263, %v627
      %v629 = vpop.f32.mrb[0].mxu0
      %v630 = vpop.f32.mrb[0].mxu0
      %v631 = vadd.f32 %v263, %v630
      %v632 = vpop.f32.mrb[0].mxu0
      %633 = vdwg.mxu0
      %634 = vmatprep.subr.bf16.mxu0 0
      %635 = vmatpush1.bf16.msra.mxu0 %v505
      %636 = vmatprep.subr.bf16.mxu0 0
      %637 = vmatpush1.bf16.msra.mxu0 %v506
      %638 = vmatprep.subr.bf16.mxu0 0
      %639 = vmatpush1.bf16.msra.mxu0 %v507
      %640 = vmatprep.subr.bf16.mxu0 0
      %641 = vmatpush1.bf16.msra.mxu0 %v508
      %642 = vmatprep.subr.bf16.mxu0 0
      %643 = vmatpush1.bf16.msra.mxu0 %v509
      %644 = vmatprep.subr.bf16.mxu0 0
      %645 = vmatpush1.bf16.msra.mxu0 %v510
      %646 = vmatprep.subr.bf16.mxu0 0
      %647 = vmatpush1.bf16.msra.mxu0 %v511
      %648 = vmatprep.subr.bf16.mxu0 0
      %649 = vmatpush1.bf16.msra.mxu0 %v512
      %650 = vmatprep.subr.bf16.mxu0 0
      %651 = vmatpush1.bf16.msra.mxu0 0
      %652 = vmatprep.subr.bf16.mxu0 0
      %653 = vmatpush1.bf16.msra.mxu0 0
      %654 = vmatprep.subr.bf16.mxu0 0
      %655 = vmatpush1.bf16.msra.mxu0 0
      %656 = vmatprep.subr.bf16.mxu0 0
      %657 = vmatpush1.bf16.msra.mxu0 0
      %658 = vmatprep.subr.bf16.mxu0 0
      %659 = vmatpush1.bf16.msra.mxu0 0
      %660 = vmatprep.subr.bf16.mxu0 0
      %661 = vmatpush1.bf16.msra.mxu0 0
      %662 = vmatprep.subr.bf16.mxu0 0
      %663 = vmatpush1.bf16.msra.mxu0 0
      %664 = vmatprep.subr.bf16.mxu0 0
      %665 = vmatpush1.bf16.msra.mxu0 0
      %666 = vmatprep.mubr.bf16.mxu0 0
      %667 = vmatmul.mubr.bf16.gmra.mrb[0].mxu0 %v347
      %v668 = vpop.f32.mrb[0].mxu0
      %v669 = vadd.f32 %v572, %v668
      %v670 = vpop.f32.mrb[0].mxu0
      %v671 = vpop.f32.mrb[0].mxu0
      %v672 = vadd.f32 %v575, %v671
      %v673 = vpop.f32.mrb[0].mxu0
      %674 = vmatprep.mubr.bf16.mxu0 0
      %675 = vmatmul.mubr.bf16.gmra.mrb[0].mxu0 %v350
      %v676 = vpop.f32.mrb[0].mxu0
      %v677 = vadd.f32 %v580, %v676
      %v678 = vpop.f32.mrb[0].mxu0
      %v679 = vpop.f32.mrb[0].mxu0
      %v680 = vadd.f32 %v583, %v679
      %v681 = vpop.f32.mrb[0].mxu0
      %682 = vmatprep.mubr.bf16.mxu0 0
      %683 = vmatmul.mubr.bf16.gmra.mrb[0].mxu0 %v353
      %v684 = vpop.f32.mrb[0].mxu0
      %v685 = vadd.f32 %v588, %v684
      %v686 = vpop.f32.mrb[0].mxu0
      %v687 = vpop.f32.mrb[0].mxu0
      %v688 = vadd.f32 %v591, %v687
      %v689 = vpop.f32.mrb[0].mxu0
      %690 = vmatprep.mubr.bf16.mxu0 0
      %691 = vmatmul.mubr.bf16.gmra.mrb[0].mxu0 %v356
      %v692 = vpop.f32.mrb[0].mxu0
      %v693 = vadd.f32 %v596, %v692
      %v694 = vpop.f32.mrb[0].mxu0
      %v695 = vpop.f32.mrb[0].mxu0
      %v696 = vadd.f32 %v599, %v695
      %v697 = vpop.f32.mrb[0].mxu0
      %698 = vmatprep.mubr.bf16.mxu0 0
      %699 = vmatmul.mubr.bf16.gmra.mrb[0].mxu0 %v359
      %v700 = vpop.f32.mrb[0].mxu0
      %v701 = vadd.f32 %v604, %v700
      %v702 = vpop.f32.mrb[0].mxu0
      %v703 = vpop.f32.mrb[0].mxu0
      %v704 = vadd.f32 %v607, %v703
      %v705 = vpop.f32.mrb[0].mxu0
      %706 = vmatprep.mubr.bf16.mxu0 0
      %707 = vmatmul.mubr.bf16.gmra.mrb[0].mxu0 %v362
      %v708 = vpop.f32.mrb[0].mxu0
      %v709 = vadd.f32 %v612, %v708
      %v710 = vpop.f32.mrb[0].mxu0
      %v711 = vpop.f32.mrb[0].mxu0
      %v712 = vadd.f32 %v615, %v711
      %v713 = vpop.f32.mrb[0].mxu0
      %714 = vmatprep.mubr.bf16.mxu0 0
      %715 = vmatmul.mubr.bf16.gmra.mrb[0].mxu0 %v365
      %v716 = vpop.f32.mrb[0].mxu0
      %v717 = vadd.f32 %v620, %v716
      %v718 = vpop.f32.mrb[0].mxu0
      %v719 = vpop.f32.mrb[0].mxu0
      %v720 = vadd.f32 %v623, %v719
      %v721 = vpop.f32.mrb[0].mxu0
      %722 = vmatprep.mubr.bf16.mxu0 0
      %723 = vmatmul.mubr.bf16.gmra.mrb[0].mxu0 %v368
      %v724 = vpop.f32.mrb[0].mxu0
      %v725 = vadd.f32 %v628, %v724
      %v726 = vpop.f32.mrb[0].mxu0
      %v727 = vpop.f32.mrb[0].mxu0
      %v728 = vadd.f32 %v631, %v727
      %v729 = vpop.f32.mrb[0].mxu0
      %730 = vdwg.mxu0
      %731 = vadd.xlane.f32.xlu0 %v669
      %v732 = vpop.xlane.xlu0 %731
      %733 = vadd.xlane.f32.xlu0 %v672
      %v734 = vpop.xlane.xlu0 %733
      %735 = vadd.xlane.f32.xlu0 %v677
      %v736 = vpop.xlane.xlu0 %735
      %737 = vadd.xlane.f32.xlu0 %v680
      %v738 = vpop.xlane.xlu0 %737
      %739 = vadd.xlane.f32.xlu0 %v685
      %v740 = vpop.xlane.xlu0 %739
      %741 = vadd.xlane.f32.xlu0 %v688
      %v742 = vpop.xlane.xlu0 %741
      %743 = vadd.xlane.f32.xlu0 %v693
      %v744 = vpop.xlane.xlu0 %743
      %745 = vadd.xlane.f32.xlu0 %v696
      %v746 = vpop.xlane.xlu0 %745
      %747 = vadd.xlane.f32.xlu0 %v701
      %v748 = vpop.xlane.xlu0 %747
      %749 = vadd.xlane.f32.xlu0 %v704
      %v750 = vpop.xlane.xlu0 %749
      %751 = vadd.xlane.f32.xlu0 %v709
      %v752 = vpop.xlane.xlu0 %751
      %753 = vadd.xlane.f32.xlu0 %v712
      %v754 = vpop.xlane.xlu0 %753
      %755 = vadd.xlane.f32.xlu0 %v717
      %v756 = vpop.xlane.xlu0 %755
      %757 = vadd.xlane.f32.xlu0 %v720
      %v758 = vpop.xlane.xlu0 %757
      %759 = vadd.xlane.f32.xlu0 %v725
      %v760 = vpop.xlane.xlu0 %759
      %761 = vadd.xlane.f32.xlu0 %v728
      %v762 = vpop.xlane.xlu0 %761
      %v763 = vmul.f32 %v732, 0.03125
      %v764 = vmul.f32 %v734, 0.03125
      %v765 = vmul.f32 %v736, 0.03125
      %v766 = vmul.f32 %v738, 0.03125
      %v767 = vmul.f32 %v740, 0.03125
      %v768 = vmul.f32 %v742, 0.03125
      %v769 = vmul.f32 %v744, 0.03125
      %v770 = vmul.f32 %v746, 0.03125
      %v771 = vmul.f32 %v748, 0.03125
      %v772 = vmul.f32 %v750, 0.03125
      %v773 = vmul.f32 %v752, 0.03125
      %v774 = vmul.f32 %v754, 0.03125
      %v775 = vmul.f32 %v756, 0.03125
      %v776 = vmul.f32 %v758, 0.03125
      %v777 = vmul.f32 %v760, 0.03125
      %v778 = vmul.f32 %v762, 0.03125
      %v779 = vlaneseq
      %v780 = vand.u32 %v779, 127
      %vm781 = vcmp.lt.s32.totalorder %v780, 32
      %v782 = vsub.f32 %v669, %v763
      %v783 = vsub.f32 %v672, %v764
      %v784 = vsub.f32 %v677, %v765
      %v785 = vsub.f32 %v680, %v766
      %v786 = vsub.f32 %v685, %v767
      %v787 = vsub.f32 %v688, %v768
      %v788 = vsub.f32 %v693, %v769
      %v789 = vsub.f32 %v696, %v770
      %v790 = vsub.f32 %v701, %v771
      %v791 = vsub.f32 %v704, %v772
      %v792 = vsub.f32 %v709, %v773
      %v793 = vsub.f32 %v712, %v774
      %v794 = vsub.f32 %v717, %v775
      %v795 = vsub.f32 %v720, %v776
      %v796 = vsub.f32 %v725, %v777
      %v797 = vsub.f32 %v728, %v778
      %v798 = vsel %vm781, %v782, 0.0
      %v799 = vsel %vm781, %v783, 0.0
      %v800 = vsel %vm781, %v784, 0.0
      %v801 = vsel %vm781, %v785, 0.0
      %v802 = vsel %vm781, %v786, 0.0
      %v803 = vsel %vm781, %v787, 0.0
      %v804 = vsel %vm781, %v788, 0.0
      %v805 = vsel %vm781, %v789, 0.0
      %v806 = vsel %vm781, %v790, 0.0
      %v807 = vsel %vm781, %v791, 0.0
      %v808 = vsel %vm781, %v792, 0.0
      %v809 = vsel %vm781, %v793, 0.0
      %v810 = vsel %vm781, %v794, 0.0
      %v811 = vsel %vm781, %v795, 0.0
      %v812 = vsel %vm781, %v796, 0.0
      %v813 = vsel %vm781, %v797, 0.0
      %v814 = vmul.f32 %v798, %v798
      %v815 = vmul.f32 %v799, %v799
      %v816 = vmul.f32 %v800, %v800
      %v817 = vmul.f32 %v801, %v801
      %v818 = vmul.f32 %v802, %v802
      %v819 = vmul.f32 %v803, %v803
      %v820 = vmul.f32 %v804, %v804
      %v821 = vmul.f32 %v805, %v805
      %v822 = vmul.f32 %v806, %v806
      %v823 = vmul.f32 %v807, %v807
      %v824 = vmul.f32 %v808, %v808
      %v825 = vmul.f32 %v809, %v809
      %v826 = vmul.f32 %v810, %v810
      %v827 = vmul.f32 %v811, %v811
      %v828 = vmul.f32 %v812, %v812
      %v829 = vmul.f32 %v813, %v813
      %830 = vadd.xlane.f32.xlu0 %v814
      %v831 = vpop.xlane.xlu0 %830
      %832 = vadd.xlane.f32.xlu0 %v815
      %v833 = vpop.xlane.xlu0 %832
      %834 = vadd.xlane.f32.xlu0 %v816
      %v835 = vpop.xlane.xlu0 %834
      %836 = vadd.xlane.f32.xlu0 %v817
      %v837 = vpop.xlane.xlu0 %836
      %838 = vadd.xlane.f32.xlu0 %v818
      %v839 = vpop.xlane.xlu0 %838
      %840 = vadd.xlane.f32.xlu0 %v819
      %v841 = vpop.xlane.xlu0 %840
      %842 = vadd.xlane.f32.xlu0 %v820
      %v843 = vpop.xlane.xlu0 %842
      %844 = vadd.xlane.f32.xlu0 %v821
      %v845 = vpop.xlane.xlu0 %844
      %846 = vadd.xlane.f32.xlu0 %v822
      %v847 = vpop.xlane.xlu0 %846
      %848 = vadd.xlane.f32.xlu0 %v823
      %v849 = vpop.xlane.xlu0 %848
      %850 = vadd.xlane.f32.xlu0 %v824
      %v851 = vpop.xlane.xlu0 %850
      %852 = vadd.xlane.f32.xlu0 %v825
      %v853 = vpop.xlane.xlu0 %852
      %854 = vadd.xlane.f32.xlu0 %v826
      %v855 = vpop.xlane.xlu0 %854
      %856 = vadd.xlane.f32.xlu0 %v827
      %v857 = vpop.xlane.xlu0 %856
      %858 = vadd.xlane.f32.xlu0 %v828
      %v859 = vpop.xlane.xlu0 %858
      %860 = vadd.xlane.f32.xlu0 %v829
      %v861 = vpop.xlane.xlu0 %860
      %v862 = vmul.f32 %v831, 0.03125
      %v863 = vmul.f32 %v833, 0.03125
      %v864 = vmul.f32 %v835, 0.03125
      %v865 = vmul.f32 %v837, 0.03125
      %v866 = vmul.f32 %v839, 0.03125
      %v867 = vmul.f32 %v841, 0.03125
      %v868 = vmul.f32 %v843, 0.03125
      %v869 = vmul.f32 %v845, 0.03125
      %v870 = vmul.f32 %v847, 0.03125
      %v871 = vmul.f32 %v849, 0.03125
      %v872 = vmul.f32 %v851, 0.03125
      %v873 = vmul.f32 %v853, 0.03125
      %v874 = vmul.f32 %v855, 0.03125
      %v875 = vmul.f32 %v857, 0.03125
      %v876 = vmul.f32 %v859, 0.03125
      %v877 = vmul.f32 %v861, 0.03125
      %v878 = vadd.f32 %v862, 1e-05
      %v879 = vadd.f32 %v863, 1e-05
      %v880 = vadd.f32 %v864, 1e-05
      %v881 = vadd.f32 %v865, 1e-05
      %v882 = vadd.f32 %v866, 1e-05
      %v883 = vadd.f32 %v867, 1e-05
      %v884 = vadd.f32 %v868, 1e-05
      %v885 = vadd.f32 %v869, 1e-05
      %v886 = vadd.f32 %v870, 1e-05
      %v887 = vadd.f32 %v871, 1e-05
      %v888 = vadd.f32 %v872, 1e-05
      %v889 = vadd.f32 %v873, 1e-05
      %v890 = vadd.f32 %v874, 1e-05
      %v891 = vadd.f32 %v875, 1e-05
      %v892 = vadd.f32 %v876, 1e-05
      %v893 = vadd.f32 %v877, 1e-05
      %v894 = vrsqrt.pop %v878
      %v895 = vrsqrt.pop %v879
      %v896 = vrsqrt.pop %v880
      %v897 = vrsqrt.pop %v881
      %v898 = vrsqrt.pop %v882
      %v899 = vrsqrt.pop %v883
      %v900 = vrsqrt.pop %v884
      %v901 = vrsqrt.pop %v885
      %v902 = vrsqrt.pop %v886
      %v903 = vrsqrt.pop %v887
      %v904 = vrsqrt.pop %v888
      %v905 = vrsqrt.pop %v889
      %v906 = vrsqrt.pop %v890
      %v907 = vrsqrt.pop %v891
      %v908 = vrsqrt.pop %v892
      %v909 = vrsqrt.pop %v893
      %v910 = vmul.f32 %v798, %v894
      %v911 = vmul.f32 %v799, %v895
      %v912 = vmul.f32 %v800, %v896
      %v913 = vmul.f32 %v801, %v897
      %v914 = vmul.f32 %v802, %v898
      %v915 = vmul.f32 %v803, %v899
      %v916 = vmul.f32 %v804, %v900
      %v917 = vmul.f32 %v805, %v901
      %v918 = vmul.f32 %v806, %v902
      %v919 = vmul.f32 %v807, %v903
      %v920 = vmul.f32 %v808, %v904
      %v921 = vmul.f32 %v809, %v905
      %v922 = vmul.f32 %v810, %v906
      %v923 = vmul.f32 %v811, %v907
      %v924 = vmul.f32 %v812, %v908
      %v925 = vmul.f32 %v813, %v909
      %v926 = vmax.f32 %v910, 0.0
      %v927 = vmax.f32 %v911, 0.0
      %v928 = vmax.f32 %v912, 0.0
      %v929 = vmax.f32 %v913, 0.0
      %v930 = vmax.f32 %v914, 0.0
      %v931 = vmax.f32 %v915, 0.0
      %v932 = vmax.f32 %v916, 0.0
      %v933 = vmax.f32 %v917, 0.0
      %v934 = vmax.f32 %v918, 0.0
      %v935 = vmax.f32 %v919, 0.0
      %v936 = vmax.f32 %v920, 0.0
      %v937 = vmax.f32 %v921, 0.0
      %v938 = vmax.f32 %v922, 0.0
      %v939 = vmax.f32 %v923, 0.0
      %v940 = vmax.f32 %v924, 0.0
      %v941 = vmax.f32 %v925, 0.0
      %v942 = vpack.c.bf16 %v927, %v926
      %v943 = vpack.c.bf16 %v929, %v928
      %v944 = vpack.c.bf16 %v931, %v930
      %v945 = vpack.c.bf16 %v933, %v932
      %v946 = vpack.c.bf16 %v935, %v934
      %v947 = vpack.c.bf16 %v937, %v936
      %v948 = vpack.c.bf16 %v939, %v938
      %v949 = vpack.c.bf16 %v941, %v940
      %v958 = vunpack.c.l.b16 %v942
      %v959 = vunpack.c.h.b16 %v942
      %v960 = vunpack.c.l.b16 %v943
      %v961 = vunpack.c.h.b16 %v943
      %v962 = vunpack.c.l.b16 %v944
      %v963 = vunpack.c.h.b16 %v944
      %v964 = vunpack.c.l.b16 %v945
      %v965 = vunpack.c.h.b16 %v945
      %v966 = vunpack.c.l.b16 %v946
      %v967 = vunpack.c.h.b16 %v946
      %v968 = vunpack.c.l.b16 %v947
      %v969 = vunpack.c.h.b16 %v947
      %v970 = vunpack.c.l.b16 %v948
      %v971 = vunpack.c.h.b16 %v948
      %v972 = vunpack.c.l.b16 %v949
      %v973 = vunpack.c.h.b16 %v949
      %v974 = vpack.c.b16 %v958, %v958
      %v975 = vpack.c.b16 %v959, %v959
      %v976 = vpack.c.b16 %v960, %v960
      %v977 = vpack.c.b16 %v961, %v961
      %v978 = vpack.c.b16 %v962, %v962
      %v979 = vpack.c.b16 %v963, %v963
      %v980 = vpack.c.b16 %v964, %v964
      %v981 = vpack.c.b16 %v965, %v965
      %v982 = vpack.c.b16 %v966, %v966
      %v983 = vpack.c.b16 %v967, %v967
      %v984 = vpack.c.b16 %v968, %v968
      %v985 = vpack.c.b16 %v969, %v969
      %v986 = vpack.c.b16 %v970, %v970
      %v987 = vpack.c.b16 %v971, %v971
      %v988 = vpack.c.b16 %v972, %v972
      %v989 = vpack.c.b16 %v973, %v973
      %1006 = vst [vmem:[%s175] sm:$0xf] %v974
      %1007 = vst [vmem:[%s175 + $0x4] sm:$0xf] %v975
      %1008 = vst [vmem:[%s175 + $0x8] sm:$0xf] %v976
      %1009 = vst [vmem:[%s175 + $0xc] sm:$0xf] %v977
      %1010 = vst [vmem:[%s175 + $0x10] sm:$0xf] %v978
      %1011 = vst [vmem:[%s175 + $0x14] sm:$0xf] %v979
      %1012 = vst [vmem:[%s175 + $0x18] sm:$0xf] %v980
      %1013 = vst [vmem:[%s175 + $0x1c] sm:$0xf] %v981
      %1014 = vst [vmem:[%s175 + $0x20] sm:$0xf] %v982
      %1015 = vst [vmem:[%s175 + $0x24] sm:$0xf] %v983
      %1016 = vst [vmem:[%s175 + $0x28] sm:$0xf] %v984
      %1017 = vst [vmem:[%s175 + $0x2c] sm:$0xf] %v985
      %1018 = vst [vmem:[%s175 + $0x30] sm:$0xf] %v986
      %1019 = vst [vmem:[%s175 + $0x34] sm:$0xf] %v987
      %1020 = vst [vmem:[%s175 + $0x38] sm:$0xf] %v988
      %1021 = vst [vmem:[%s175 + $0x3c] sm:$0xf] %v989
      %s1022 = smul.u32 16, %s14
      %p1023 = scmp.lt.s32.totalorder %s1022, 47
      %s1024 = scalar_select %p1023, %s1022, 47
      %s1025 = smul.addr %s1024, 4
      %s1026 = scalar_lea.vmem %s3, %s1025
      // Predicated region
      $region33: #{gcn_node_forward.10} parent=31 // pred_check
        %p1027 = pneg %p100
      $region34: #{gcn_node_forward.10} parent=31 // pred_check_branch
        %1029 = sbr.rel (%p1027) target = $region36
      $region35: #{gcn_node_forward.10} parent=31 // pred_region
        %s1030 = smul.u32 16, %s14
      $region36: #{gcn_node_forward.10} parent=31 // pred_fallthru
        _
    $region32: #{gcn_node_forward.10} parent=5 // pred_fallthru
      _
    %p1031 = scmp.le.s32.totalorder 2, %s9
    // Predicated region
    $region37: #{gcn_node_forward.10} parent=5 // pred_check
      %p1032 = pneg %p1031
    $region38: #{gcn_node_forward.10} parent=5 // pred_check_branch
      %1034 = sbr.rel (%p1032) target = $region40
    $region39: #{gcn_node_forward.10} parent=5 // pred_region
      %s1035 = ssub.s32 %s9, 2
      // Predicated region
      $region41: #{gcn_node_forward.10} parent=39 // pred_check
        %p1036 = pneg %p106
      $region42: #{gcn_node_forward.10} parent=39 // pred_check_branch
        %1038 = sbr.rel (%p1036) target = $region44
      $region43: #{gcn_node_forward.10} parent=39 // pred_region
        %s1039 = smul.u32 16, %s15
        %p1040 = scmp.lt.s32.totalorder %s1039, 47
        %s1041 = scalar_select %p1040, %s1039, 47
        %s1042 = smul.addr %s1041, 4
        %s1043 = scalar_lea.vmem %s3, %s1042
      $region44: #{gcn_node_forward.10} parent=39 // pred_fallthru
        _
    $region40: #{gcn_node_forward.10} parent=5 // pred_fallthru
      _
  $region6: #{gcn_node_forward.10} parent=0 // loop_footer
    %s13 = sadd.s32 1, %s9
  $region7: #{gcn_node_forward.10} parent=0 // loop_footer_branch
    %8 = sbr.rel target = $region3
  $region8: #{gcn_node_forward.10} parent=0 // loop_exit
    _

</llo_original>
